<compile_context>
chip_gen: v7x
topology: tpu7x:2x2x1
jax: 0.10.0
libtpu: 0.0.40
codegen_flags: <defaults>
</compile_context>

<pallas_src>
import functools

import jax
import jax.numpy as jnp
import numpy as np
from jax.experimental import pallas as pl
from jax.experimental.pallas import tpu as pltpu

# ----------------------------- configuration (small, forward-consistent) ----
CFG = dict(
    batch=2,      # B
    in_ch=3,      # RGB
    image=16,     # 16x16 image
    patch=4,      # 4x4 patches -> 16 patches, seq = 17 (with class token)
    width=32,     # transformer width D (stand-in for 1024 in ViT-L/14)
    heads=4,      # attention heads
    layers=2,     # residual attention blocks
    num_classes=1,
)
LN_EPS = 1e-5
BF16 = jnp.bfloat16


def _round_up(v, m):
    return ((v + m - 1) // m) * m


def _row_block(m, cap=256):
    """Largest multiple of 8 that divides m (capped); falls back to full m."""
    if m % 8:
        return m
    bm = min(m, cap)
    while m % bm:
        bm -= 8
    return bm


def _parallel(n_axes=1):
    return pltpu.CompilerParams(dimension_semantics=("parallel",) * n_axes)


def _ln_f32(x, g, b):
    """LayerNorm with f32 statistics. x:(rows, D) f32, g/b:(1, D)."""
    mean = jnp.mean(x, axis=-1, keepdims=True)
    xc = x - mean
    var = jnp.mean(xc * xc, axis=-1, keepdims=True)
    return xc * jax.lax.rsqrt(var + LN_EPS) * g + b


# ----------------------------- Pallas kernels --------------------------------
def _matmul_bias_kernel(x_ref, w_ref, b_ref, o_ref):
    """y = x @ w + b. Operands cast to bf16, f32 MXU accumulation."""
    x = x_ref[...].astype(BF16)
    acc = jnp.dot(x, w_ref[...], preferred_element_type=jnp.float32) + b_ref[...]
    o_ref[...] = acc.astype(o_ref.dtype)


def matmul_bias(x, w_bf16, b):
    """x:(M,K) f32, w_bf16:(K,N) bf16, b:(N,) f32 -> (M,N) f32. Gridded over rows."""
    M, K = x.shape
    N = w_bf16.shape[1]
    BM = _row_block(M)
    return pl.pallas_call(
        _matmul_bias_kernel,
        grid=(M // BM,),
        in_specs=[pl.BlockSpec((BM, K), lambda i: (i, 0)),
                  pl.BlockSpec((K, N), lambda i: (0, 0)),
                  pl.BlockSpec((1, N), lambda i: (0, 0))],
        out_specs=pl.BlockSpec((BM, N), lambda i: (i, 0)),
        out_shape=jax.ShapeDtypeStruct((M, N), x.dtype),
        compiler_params=_parallel(),
    )(x, w_bf16, b.reshape(1, N))


def _ln_kernel(x_ref, g_ref, b_ref, o_ref):
    x = x_ref[...].astype(jnp.float32)
    o_ref[...] = _ln_f32(x, g_ref[...], b_ref[...]).astype(o_ref.dtype)


def layer_norm(x, gamma, beta):
    """LayerNorm over last axis, gridded over row blocks. x:(M,D)."""
    M, D = x.shape
    BM = _row_block(M)
    row = pl.BlockSpec((BM, D), lambda i: (i, 0))
    vec = pl.BlockSpec((1, D), lambda i: (0, 0))
    return pl.pallas_call(
        _ln_kernel,
        grid=(M // BM,),
        in_specs=[row, vec, vec],
        out_specs=row,
        out_shape=jax.ShapeDtypeStruct((M, D), x.dtype),
        compiler_params=_parallel(),
    )(x, gamma.reshape(1, D), beta.reshape(1, D))


def _attn_block_kernel(h_ref, g_ref, b_ref, wqkv_ref, bqkv_ref, wout_ref, bout_ref,
                       o_ref, *, heads, s_real, scale):
    """Fused: LN1 -> QKV proj -> multi-head attention -> out_proj -> residual add.

    One grid step == one batch element, all heads processed inside it.
    """
    h = h_ref[0].astype(jnp.float32)                       # (SP, D)
    SP, D = h.shape
    Dh = D // heads

    # LayerNorm (f32 statistics).
    y = _ln_f32(h, g_ref[...], b_ref[...])

    # Fused QKV projection (bf16 operands, f32 accumulation on the MXU).
    qkv = jnp.dot(y.astype(BF16), wqkv_ref[...],
                  preferred_element_type=jnp.float32) + bqkv_ref[...]   # (SP, 3D)

    # Mask padded key positions (>= s_real) so padding never affects real tokens.
    kidx = jax.lax.broadcasted_iota(jnp.int32, (SP, SP), 1)
    kmask = kidx < s_real

    outs = []
    for hd in range(heads):                                # static unroll over heads
        q = qkv[:, hd * Dh:(hd + 1) * Dh]
        k = qkv[:, D + hd * Dh:D + (hd + 1) * Dh]
        v = qkv[:, 2 * D + hd * Dh:2 * D + (hd + 1) * Dh]
        s = jax.lax.dot_general(q.astype(BF16), k.astype(BF16),
                                (((1,), (1,)), ((), ())),
                                preferred_element_type=jnp.float32) * scale
        s = jnp.where(kmask, s, -1e30)
        m = jnp.max(s, axis=-1, keepdims=True)
        p = jnp.exp(s - m)
        denom = jnp.sum(p, axis=-1, keepdims=True)
        p = p * pl.reciprocal(denom, approx=True)          # EUP slot: ~free
        outs.append(jnp.dot(p.astype(BF16), v.astype(BF16),
                            preferred_element_type=jnp.float32))
    attn = jnp.concatenate(outs, axis=-1)                  # (SP, D)

    out = jnp.dot(attn.astype(BF16), wout_ref[...],
                  preferred_element_type=jnp.float32) + bout_ref[...]
    o_ref[0] = (h + out).astype(o_ref.dtype)               # residual add


def attn_block(h, ln_g, ln_b, wqkv_bf16, bqkv, wout_bf16, bout, *, heads, s_real):
    """h:(B, SP, D) f32 -> (B, SP, D) f32 (whole attention residual branch)."""
    B, SP, D = h.shape
    scale = 1.0 / float(np.sqrt(D // heads))
    h_spec = pl.BlockSpec((1, SP, D), lambda i: (i, 0, 0))
    vec = lambda n: pl.BlockSpec((1, n), lambda i: (0, 0))
    mat = lambda r, c: pl.BlockSpec((r, c), lambda i: (0, 0))
    return pl.pallas_call(
        functools.partial(_attn_block_kernel, heads=heads, s_real=s_real, scale=scale),
        grid=(B,),
        in_specs=[h_spec, vec(D), vec(D),
                  mat(D, 3 * D), vec(3 * D),
                  mat(D, D), vec(D)],
        out_specs=h_spec,
        out_shape=jax.ShapeDtypeStruct((B, SP, D), h.dtype),
        compiler_params=_parallel(),
    )(h, ln_g.reshape(1, D), ln_b.reshape(1, D),
      wqkv_bf16, bqkv.reshape(1, 3 * D), wout_bf16, bout.reshape(1, D))


def _mlp_block_kernel(h_ref, g_ref, b_ref, wfc_ref, bfc_ref, wproj_ref, bproj_ref, o_ref):
    """Fused: LN2 -> c_fc -> QuickGELU -> c_proj -> residual add."""
    h = h_ref[...].astype(jnp.float32)                     # (BM, D)
    y = _ln_f32(h, g_ref[...], b_ref[...])
    u = jnp.dot(y.astype(BF16), wfc_ref[...],
                preferred_element_type=jnp.float32) + bfc_ref[...]
    u = u * jax.nn.sigmoid(1.702 * u)                      # QuickGELU in f32
    out = jnp.dot(u.astype(BF16), wproj_ref[...],
                  preferred_element_type=jnp.float32) + bproj_ref[...]
    o_ref[...] = (h + out).astype(o_ref.dtype)


def mlp_block(h, ln_g, ln_b, wfc_bf16, bfc, wproj_bf16, bproj):
    """h:(B, SP, D) f32 -> (B, SP, D) f32 (whole MLP residual branch)."""
    B, SP, D = h.shape
    Dff = wfc_bf16.shape[1]
    M = B * SP
    BM = _row_block(M)
    row = pl.BlockSpec((BM, D), lambda i: (i, 0))
    vec = lambda n: pl.BlockSpec((1, n), lambda i: (0, 0))
    mat = lambda r, c: pl.BlockSpec((r, c), lambda i: (0, 0))
    out = pl.pallas_call(
        _mlp_block_kernel,
        grid=(M // BM,),
        in_specs=[row, vec(D), vec(D),
                  mat(D, Dff), vec(Dff),
                  mat(Dff, D), vec(D)],
        out_specs=row,
        out_shape=jax.ShapeDtypeStruct((M, D), h.dtype),
        compiler_params=_parallel(),
    )(h.reshape(M, D), ln_g.reshape(1, D), ln_b.reshape(1, D),
      wfc_bf16, bfc.reshape(1, Dff), wproj_bf16, bproj.reshape(1, D))
    return out.reshape(B, SP, D)


def _ln_linear_kernel(x_ref, g_ref, b_ref, w_ref, bw_ref, o_ref):
    """Fused ln_post + fc head (the module's penultimate feature -> logits)."""
    x = x_ref[...].astype(jnp.float32)
    feats = _ln_f32(x, g_ref[...], b_ref[...])
    o_ref[...] = (jnp.dot(feats.astype(BF16), w_ref[...],
                          preferred_element_type=jnp.float32)
                  + bw_ref[...]).astype(o_ref.dtype)


def ln_linear(x, gamma, beta, w_bf16, b):
    M, D = x.shape
    N = w_bf16.shape[1]
    return pl.pallas_call(
        _ln_linear_kernel,
        out_shape=jax.ShapeDtypeStruct((M, N), x.dtype),
    )(x, gamma.reshape(1, D), beta.reshape(1, D), w_bf16, b.reshape(1, N))


# ----------------------------- model forward ---------------------------------
def clip_penultimate_forward(params, x):
    B, C, Himg, Wimg = x.shape
    P, D, Hh = CFG["patch"], CFG["width"], CFG["heads"]
    gh, gw = Himg // P, Wimg // P
    S = gh * gw + 1
    SP = _round_up(S, 8)                       # sublane-dense sequence length

    # patch embedding: Conv2d(C, D, kernel=P, stride=P, bias=False) == matmul
    patches = (x.reshape(B, C, gh, P, gw, P)
                .transpose(0, 2, 4, 1, 3, 5)
                .reshape(B * gh * gw, C * P * P))
    w_conv = params["conv1_w"].reshape(D, C * P * P).T.astype(BF16)
    emb = matmul_bias(patches, w_conv, jnp.zeros((D,), x.dtype)).reshape(B, gh * gw, D)

    # class token + positional embedding, then pad seq 17 -> 24 with zero rows.
    cls = jnp.broadcast_to(params["class_embedding"].reshape(1, 1, D), (B, 1, D))
    h = jnp.concatenate([cls, emb], axis=1) + params["positional_embedding"][None]
    h = jnp.pad(h, ((0, 0), (0, SP - S), (0, 0)))

    # ln_pre
    h = layer_norm(h.reshape(B * SP, D),
                   params["ln_pre_g"], params["ln_pre_b"]).reshape(B, SP, D)

    # transformer: each ResidualAttentionBlock == 2 fused pallas_calls
    for blk in params["blocks"]:
        h = attn_block(h, blk["ln1_g"], blk["ln1_b"],
                       blk["in_proj_w"].T.astype(BF16), blk["in_proj_b"],
                       blk["out_proj_w"].T.astype(BF16), blk["out_proj_b"],
                       heads=Hh, s_real=S)
        h = mlp_block(h, blk["ln2_g"], blk["ln2_b"],
                      blk["c_fc_w"].T.astype(BF16), blk["c_fc_b"],
                      blk["c_proj_w"].T.astype(BF16), blk["c_proj_b"])

    # ln_post on class token (the hooked "penultimate" feature) fused with fc head.
    logits = ln_linear(h[:, 0, :], params["ln_post_g"], params["ln_post_b"],
                       params["fc_w"].T.astype(BF16), params["fc_b"])
    return logits


# ----------------------------- pure-JAX reference (correctness check) --------
# The reference mirrors the kernels' mixed-precision policy (bf16 matmul operands,
# f32 accumulation, f32 LN/softmax) so the comparison isolates kernel correctness.
def _bf16_matmul(a, b):
    return jnp.dot(a.astype(BF16), b.astype(BF16), preferred_element_type=jnp.float32)


def _ln_ref(x, g, b):
    m = jnp.mean(x, -1, keepdims=True)
    v = jnp.mean((x - m) ** 2, -1, keepdims=True)
    return (x - m) / jnp.sqrt(v + LN_EPS) * g + b


def reference_forward(params, x):
    B, C, Himg, Wimg = x.shape
    P, D, Hh = CFG["patch"], CFG["width"], CFG["heads"]
    gh, gw = Himg // P, Wimg // P
    S = gh * gw + 1
    Dh = D // Hh
    scale = 1.0 / float(np.sqrt(Dh))

    patches = (x.reshape(B, C, gh, P, gw, P)
                .transpose(0, 2, 4, 1, 3, 5)
                .reshape(B * gh * gw, C * P * P))
    emb = _bf16_matmul(patches, params["conv1_w"].reshape(D, C * P * P).T)
    emb = emb.reshape(B, gh * gw, D)
    cls = jnp.broadcast_to(params["class_embedding"].reshape(1, 1, D), (B, 1, D))
    h = jnp.concatenate([cls, emb], axis=1) + params["positional_embedding"][None]
    h = _ln_ref(h, params["ln_pre_g"], params["ln_pre_b"])

    for blk in params["blocks"]:
        y = _ln_ref(h, blk["ln1_g"], blk["ln1_b"]).reshape(B * S, D)
        qkv = _bf16_matmul(y, blk["in_proj_w"].T) + blk["in_proj_b"]
        qkv = qkv.reshape(B, S, 3, Hh, Dh).transpose(2, 0, 3, 1, 4)  # (3,B,H,S,Dh)
        q, k, v = qkv[0], qkv[1], qkv[2]
        s = jnp.einsum("bhqd,bhkd->bhqk", q.astype(BF16), k.astype(BF16),
                       preferred_element_type=jnp.float32) * scale
        p = jax.nn.softmax(s, axis=-1)
        o = jnp.einsum("bhqk,bhkd->bhqd", p.astype(BF16), v.astype(BF16),
                       preferred_element_type=jnp.float32)
        o = o.transpose(0, 2, 1, 3).reshape(B * S, D)
        o = _bf16_matmul(o, blk["out_proj_w"].T) + blk["out_proj_b"]
        h = h + o.reshape(B, S, D)

        y = _ln_ref(h, blk["ln2_g"], blk["ln2_b"]).reshape(B * S, D)
        u = _bf16_matmul(y, blk["c_fc_w"].T) + blk["c_fc_b"]
        u = u * jax.nn.sigmoid(1.702 * u)
        u = _bf16_matmul(u, blk["c_proj_w"].T) + blk["c_proj_b"]
        h = h + u.reshape(B, S, D)

    feats = _ln_ref(h[:, 0, :], params["ln_post_g"], params["ln_post_b"])
    return _bf16_matmul(feats, params["fc_w"].T) + params["fc_b"]


# ----------------------------- deterministic parameter init ------------------
def init_params(key):
    D, P, C = CFG["width"], CFG["patch"], CFG["in_ch"]
    S = (CFG["image"] // P) ** 2 + 1
    keys = iter(jax.random.split(key, 64))

    def nrm(shape, scale=0.02):
        return (scale * jax.random.normal(next(keys), shape)).astype(jnp.float32)

    params = {
        "conv1_w": nrm((D, C, P, P), 0.05),
        "class_embedding": nrm((D,), 0.05),
        "positional_embedding": nrm((S, D), 0.02),
        "ln_pre_g": 1.0 + nrm((D,), 0.05), "ln_pre_b": nrm((D,), 0.05),
        "ln_post_g": 1.0 + nrm((D,), 0.05), "ln_post_b": nrm((D,), 0.05),
        "fc_w": nrm((CFG["num_classes"], D), 0.05),
        "fc_b": nrm((CFG["num_classes"],), 0.02),
        "blocks": [],
    }
    for _ in range(CFG["layers"]):
        params["blocks"].append({
            "ln1_g": 1.0 + nrm((D,), 0.05), "ln1_b": nrm((D,), 0.05),
            "in_proj_w": nrm((3 * D, D), 0.05), "in_proj_b": nrm((3 * D,), 0.02),
            "out_proj_w": nrm((D, D), 0.05), "out_proj_b": nrm((D,), 0.02),
            "ln2_g": 1.0 + nrm((D,), 0.05), "ln2_b": nrm((D,), 0.05),
            "c_fc_w": nrm((4 * D, D), 0.05), "c_fc_b": nrm((4 * D,), 0.02),
            "c_proj_w": nrm((D, 4 * D), 0.05), "c_proj_b": nrm((D,), 0.02),
        })
    return params


# ----------------------------- main -------------------------------------------
if __name__ == "__main__":
    root = jax.random.PRNGKey(0)
    pkey, xkey = jax.random.split(root)
    params = init_params(pkey)
    x = jax.random.normal(
        xkey, (CFG["batch"], CFG["in_ch"], CFG["image"], CFG["image"]), dtype=jnp.float32
    )

    fwd = jax.jit(clip_penultimate_forward)
    out = jax.block_until_ready(fwd(params, x))

    ref = jax.block_until_ready(reference_forward(params, x))
    assert out.shape == (CFG["batch"], CFG["num_classes"])
    # Tolerance sized for the mixed-precision path (bf16 matmul operands shared
    # with the reference) plus the EUP approximate-reciprocal softmax in the
    # kernel; structural bugs would be orders of magnitude larger.
    np.testing.assert_allclose(np.asarray(out), np.asarray(ref), rtol=1e-2, atol=1e-2)
    print("KERNEL_OK")
</pallas_src>

<mosaic_0001>
module attributes {stable_mosaic.version = 11 : i64} {
  func.func @_matmul_bias_kernel(%arg0: i32, %arg1: memref<32x48xf32, #tpu.memory_space<vmem>>, %arg2: memref<48x32xbf16, #tpu.memory_space<vmem>>, %arg3: memref<1x32xf32, #tpu.memory_space<vmem>>, %arg4: memref<32x32xf32, #tpu.memory_space<vmem>>) attributes {dimension_semantics = [#tpu.dimension_semantics<parallel>], iteration_bounds = array<i64: 1>, scalar_prefetch = 0 : i64, scratch_operands = 0 : i64, tpu.core_type = #tpu.core_type<tc>, window_params = [{transform_indices = @transform_0, window_bounds = array<i64: 32, 48>}, {pipeline_mode = #tpu.pipeline_mode<synchronous>, transform_indices = @transform_1, window_bounds = array<i64: 48, 32>}, {pipeline_mode = #tpu.pipeline_mode<synchronous>, transform_indices = @transform_2, window_bounds = array<i64: 1, 32>}, {transform_indices = @transform_3, window_bounds = array<i64: 32, 32>}]} {
    %c0 = arith.constant 0 : index
    %c0_0 = arith.constant 0 : index
    %0 = vector.load %arg1[%c0, %c0_0] : memref<32x48xf32, #tpu.memory_space<vmem>>, vector<32x48xf32>
    %1 = arith.truncf %0 : vector<32x48xf32> to vector<32x48xbf16>
    %c0_1 = arith.constant 0 : index
    %c0_2 = arith.constant 0 : index
    %2 = vector.load %arg2[%c0_1, %c0_2] : memref<48x32xbf16, #tpu.memory_space<vmem>>, vector<48x32xbf16>
    %cst = arith.constant dense<0.000000e+00> : vector<32x32xf32>
    %3 = tpu.matmul %1, %2, %cst {dimension_numbers = #tpu.dot_dimension_numbers<[1], [0], [0], [1], [0, 0, 1, 1], [], []>} : vector<32x48xbf16>, vector<48x32xbf16>, vector<32x32xf32> -> vector<32x32xf32>
    %c0_3 = arith.constant 0 : index
    %c0_4 = arith.constant 0 : index
    %4 = vector.load %arg3[%c0_3, %c0_4] : memref<1x32xf32, #tpu.memory_space<vmem>>, vector<1x32xf32>
    %5 = vector.broadcast %4 : vector<1x32xf32> to vector<32x32xf32>
    %6 = arith.addf %3, %5 : vector<32x32xf32>
    %c0_5 = arith.constant 0 : index
    %c0_6 = arith.constant 0 : index
    %7 = vector.load %arg4[%c0_5, %c0_6] : memref<32x32xf32, #tpu.memory_space<vmem>>, vector<32x32xf32>
    tpu.vector_store %arg4[%c0_5, %c0_6], %6 {strides = array<i32>} : memref<32x32xf32, #tpu.memory_space<vmem>>, vector<32x32xf32>,
    return
  }
  func.func @transform_0(%arg0: i32) -> (i32, i32) {
    %c0_i32 = arith.constant 0 : i32
    %c0_i32_0 = arith.constant 0 : i32
    return %arg0, %c0_i32 : i32, i32
  }
  func.func @transform_1(%arg0: i32) -> (i32, i32) {
    %c0_i32 = arith.constant 0 : i32
    %c0_i32_0 = arith.constant 0 : i32
    %c0_i32_1 = arith.constant 0 : i32
    return %c0_i32, %c0_i32_0 : i32, i32
  }
  func.func @transform_2(%arg0: i32) -> (i32, i32) {
    %c0_i32 = arith.constant 0 : i32
    %c0_i32_0 = arith.constant 0 : i32
    %c0_i32_1 = arith.constant 0 : i32
    return %c0_i32, %c0_i32_0 : i32, i32
  }
  func.func @transform_3(%arg0: i32) -> (i32, i32) {
    %c0_i32 = arith.constant 0 : i32
    %c0_i32_0 = arith.constant 0 : i32
    return %arg0, %c0_i32 : i32, i32
  }
}

module attributes {stable_mosaic.version = 11 : i64} {
  func.func @_ln_kernel(%arg0: i32, %arg1: memref<48x32xf32, #tpu.memory_space<vmem>>, %arg2: memref<1x32xf32, #tpu.memory_space<vmem>>, %arg3: memref<1x32xf32, #tpu.memory_space<vmem>>, %arg4: memref<48x32xf32, #tpu.memory_space<vmem>>) attributes {dimension_semantics = [#tpu.dimension_semantics<parallel>], iteration_bounds = array<i64: 1>, scalar_prefetch = 0 : i64, scratch_operands = 0 : i64, tpu.core_type = #tpu.core_type<tc>, window_params = [{transform_indices = @transform_0, window_bounds = array<i64: 48, 32>}, {pipeline_mode = #tpu.pipeline_mode<synchronous>, transform_indices = @transform_1, window_bounds = array<i64: 1, 32>}, {pipeline_mode = #tpu.pipeline_mode<synchronous>, transform_indices = @transform_2, window_bounds = array<i64: 1, 32>}, {transform_indices = @transform_3, window_bounds = array<i64: 48, 32>}]} {
    %c0 = arith.constant 0 : index
    %c0_0 = arith.constant 0 : index
    %0 = vector.load %arg1[%c0, %c0_0] : memref<48x32xf32, #tpu.memory_space<vmem>>, vector<48x32xf32>
    %c0_1 = arith.constant 0 : index
    %c0_2 = arith.constant 0 : index
    %1 = vector.load %arg2[%c0_1, %c0_2] : memref<1x32xf32, #tpu.memory_space<vmem>>, vector<1x32xf32>
    %c0_3 = arith.constant 0 : index
    %c0_4 = arith.constant 0 : index
    %2 = vector.load %arg3[%c0_3, %c0_4] : memref<1x32xf32, #tpu.memory_space<vmem>>, vector<1x32xf32>
    %cst = arith.constant dense<0.000000e+00> : vector<48xf32>
    %3 = vector.multi_reduction <add>, %0, %cst [1] : vector<48x32xf32> to vector<48xf32>
    %4 = vector.shape_cast %3 : vector<48xf32> to vector<48x1xf32>
    %cst_5 = arith.constant 3.200000e+01 : f32
    %5 = vector.broadcast %cst_5 : f32 to vector<48x1xf32>
    %6 = arith.divf %4, %5 : vector<48x1xf32>
    %7 = vector.broadcast %6 : vector<48x1xf32> to vector<48x32xf32>
    %8 = arith.subf %0, %7 : vector<48x32xf32>
    %9 = arith.mulf %8, %8 : vector<48x32xf32>
    %cst_6 = arith.constant dense<0.000000e+00> : vector<48xf32>
    %10 = vector.multi_reduction <add>, %9, %cst_6 [1] : vector<48x32xf32> to vector<48xf32>
    %11 = vector.shape_cast %10 : vector<48xf32> to vector<48x1xf32>
    %cst_7 = arith.constant 3.200000e+01 : f32
    %12 = vector.broadcast %cst_7 : f32 to vector<48x1xf32>
    %13 = arith.divf %11, %12 : vector<48x1xf32>
    %cst_8 = arith.constant 9.99999974E-6 : f32
    %14 = vector.broadcast %cst_8 : f32 to vector<48x1xf32>
    %15 = arith.addf %13, %14 : vector<48x1xf32>
    %16 = math.rsqrt %15 : vector<48x1xf32>
    %17 = vector.broadcast %16 : vector<48x1xf32> to vector<48x32xf32>
    %18 = arith.mulf %8, %17 : vector<48x32xf32>
    %19 = vector.broadcast %1 : vector<1x32xf32> to vector<48x32xf32>
    %20 = arith.mulf %18, %19 : vector<48x32xf32>
    %21 = vector.broadcast %2 : vector<1x32xf32> to vector<48x32xf32>
    %22 = arith.addf %20, %21 : vector<48x32xf32>
    %c0_9 = arith.constant 0 : index
    %c0_10 = arith.constant 0 : index
    %23 = vector.load %arg4[%c0_9, %c0_10] : memref<48x32xf32, #tpu.memory_space<vmem>>, vector<48x32xf32>
    tpu.vector_store %arg4[%c0_9, %c0_10], %22 {strides = array<i32>} : memref<48x32xf32, #tpu.memory_space<vmem>>, vector<48x32xf32>,
    return
  }
  func.func @transform_0(%arg0: i32) -> (i32, i32) {
    %c0_i32 = arith.constant 0 : i32
    %c0_i32_0 = arith.constant 0 : i32
    return %arg0, %c0_i32 : i32, i32
  }
  func.func @transform_1(%arg0: i32) -> (i32, i32) {
    %c0_i32 = arith.constant 0 : i32
    %c0_i32_0 = arith.constant 0 : i32
    %c0_i32_1 = arith.constant 0 : i32
    return %c0_i32, %c0_i32_0 : i32, i32
  }
  func.func @transform_2(%arg0: i32) -> (i32, i32) {
    %c0_i32 = arith.constant 0 : i32
    %c0_i32_0 = arith.constant 0 : i32
    %c0_i32_1 = arith.constant 0 : i32
    return %c0_i32, %c0_i32_0 : i32, i32
  }
  func.func @transform_3(%arg0: i32) -> (i32, i32) {
    %c0_i32 = arith.constant 0 : i32
    %c0_i32_0 = arith.constant 0 : i32
    return %arg0, %c0_i32 : i32, i32
  }
}

module attributes {stable_mosaic.version = 11 : i64} {
  func.func @_mlp_block_kernel(%arg0: i32, %arg1: memref<48x32xf32, #tpu.memory_space<vmem>>, %arg2: memref<1x32xf32, #tpu.memory_space<vmem>>, %arg3: memref<1x32xf32, #tpu.memory_space<vmem>>, %arg4: memref<32x128xbf16, #tpu.memory_space<vmem>>, %arg5: memref<1x128xf32, #tpu.memory_space<vmem>>, %arg6: memref<128x32xbf16, #tpu.memory_space<vmem>>, %arg7: memref<1x32xf32, #tpu.memory_space<vmem>>, %arg8: memref<48x32xf32, #tpu.memory_space<vmem>>) attributes {dimension_semantics = [#tpu.dimension_semantics<parallel>], iteration_bounds = array<i64: 1>, scalar_prefetch = 0 : i64, scratch_operands = 0 : i64, tpu.core_type = #tpu.core_type<tc>, window_params = [{transform_indices = @transform_0, window_bounds = array<i64: 48, 32>}, {pipeline_mode = #tpu.pipeline_mode<synchronous>, transform_indices = @transform_1, window_bounds = array<i64: 1, 32>}, {pipeline_mode = #tpu.pipeline_mode<synchronous>, transform_indices = @transform_2, window_bounds = array<i64: 1, 32>}, {pipeline_mode = #tpu.pipeline_mode<synchronous>, transform_indices = @transform_3, window_bounds = array<i64: 32, 128>}, {pipeline_mode = #tpu.pipeline_mode<synchronous>, transform_indices = @transform_4, window_bounds = array<i64: 1, 128>}, {pipeline_mode = #tpu.pipeline_mode<synchronous>, transform_indices = @transform_5, window_bounds = array<i64: 128, 32>}, {pipeline_mode = #tpu.pipeline_mode<synchronous>, transform_indices = @transform_6, window_bounds = array<i64: 1, 32>}, {transform_indices = @transform_7, window_bounds = array<i64: 48, 32>}]} {
    %c0 = arith.constant 0 : index
    %c0_0 = arith.constant 0 : index
    %0 = vector.load %arg1[%c0, %c0_0] : memref<48x32xf32, #tpu.memory_space<vmem>>, vector<48x32xf32>
    %c0_1 = arith.constant 0 : index
    %c0_2 = arith.constant 0 : index
    %1 = vector.load %arg2[%c0_1, %c0_2] : memref<1x32xf32, #tpu.memory_space<vmem>>, vector<1x32xf32>
    %c0_3 = arith.constant 0 : index
    %c0_4 = arith.constant 0 : index
    %2 = vector.load %arg3[%c0_3, %c0_4] : memref<1x32xf32, #tpu.memory_space<vmem>>, vector<1x32xf32>
    %cst = arith.constant dense<0.000000e+00> : vector<48xf32>
    %3 = vector.multi_reduction <add>, %0, %cst [1] : vector<48x32xf32> to vector<48xf32>
    %4 = vector.shape_cast %3 : vector<48xf32> to vector<48x1xf32>
    %cst_5 = arith.constant 3.200000e+01 : f32
    %5 = vector.broadcast %cst_5 : f32 to vector<48x1xf32>
    %6 = arith.divf %4, %5 : vector<48x1xf32>
    %7 = vector.broadcast %6 : vector<48x1xf32> to vector<48x32xf32>
    %8 = arith.subf %0, %7 : vector<48x32xf32>
    %9 = arith.mulf %8, %8 : vector<48x32xf32>
    %cst_6 = arith.constant dense<0.000000e+00> : vector<48xf32>
    %10 = vector.multi_reduction <add>, %9, %cst_6 [1] : vector<48x32xf32> to vector<48xf32>
    %11 = vector.shape_cast %10 : vector<48xf32> to vector<48x1xf32>
    %cst_7 = arith.constant 3.200000e+01 : f32
    %12 = vector.broadcast %cst_7 : f32 to vector<48x1xf32>
    %13 = arith.divf %11, %12 : vector<48x1xf32>
    %cst_8 = arith.constant 9.99999974E-6 : f32
    %14 = vector.broadcast %cst_8 : f32 to vector<48x1xf32>
    %15 = arith.addf %13, %14 : vector<48x1xf32>
    %16 = math.rsqrt %15 : vector<48x1xf32>
    %17 = vector.broadcast %16 : vector<48x1xf32> to vector<48x32xf32>
    %18 = arith.mulf %8, %17 : vector<48x32xf32>
    %19 = vector.broadcast %1 : vector<1x32xf32> to vector<48x32xf32>
    %20 = arith.mulf %18, %19 : vector<48x32xf32>
    %21 = vector.broadcast %2 : vector<1x32xf32> to vector<48x32xf32>
    %22 = arith.addf %20, %21 : vector<48x32xf32>
    %23 = arith.truncf %22 : vector<48x32xf32> to vector<48x32xbf16>
    %c0_9 = arith.constant 0 : index
    %c0_10 = arith.constant 0 : index
    %24 = vector.load %arg4[%c0_9, %c0_10] : memref<32x128xbf16, #tpu.memory_space<vmem>>, vector<32x128xbf16>
    %cst_11 = arith.constant dense<0.000000e+00> : vector<48x128xf32>
    %25 = tpu.matmul %23, %24, %cst_11 {dimension_numbers = #tpu.dot_dimension_numbers<[1], [0], [0], [1], [0, 0, 1, 1], [], []>} : vector<48x32xbf16>, vector<32x128xbf16>, vector<48x128xf32> -> vector<48x128xf32>
    %c0_12 = arith.constant 0 : index
    %c0_13 = arith.constant 0 : index
    %26 = vector.load %arg5[%c0_12, %c0_13] : memref<1x128xf32, #tpu.memory_space<vmem>>, vector<1x128xf32>
    %27 = vector.broadcast %26 : vector<1x128xf32> to vector<48x128xf32>
    %28 = arith.addf %25, %27 : vector<48x128xf32>
    %cst_14 = arith.constant 1.702000e+00 : f32
    %29 = vector.broadcast %cst_14 : f32 to vector<48x128xf32>
    %30 = arith.mulf %29, %28 : vector<48x128xf32>
    %31 = arith.negf %30 : vector<48x128xf32>
    %32 = math.exp %31 : vector<48x128xf32>
    %cst_15 = arith.constant 1.000000e+00 : f32
    %33 = vector.broadcast %cst_15 : f32 to vector<48x128xf32>
    %34 = arith.addf %33, %32 : vector<48x128xf32>
    %35 = arith.divf %33, %34 : vector<48x128xf32>
    %36 = arith.mulf %28, %35 : vector<48x128xf32>
    %37 = arith.truncf %36 : vector<48x128xf32> to vector<48x128xbf16>
    %c0_16 = arith.constant 0 : index
    %c0_17 = arith.constant 0 : index
    %38 = vector.load %arg6[%c0_16, %c0_17] : memref<128x32xbf16, #tpu.memory_space<vmem>>, vector<128x32xbf16>
    %cst_18 = arith.constant dense<0.000000e+00> : vector<48x32xf32>
    %39 = tpu.matmul %37, %38, %cst_18 {dimension_numbers = #tpu.dot_dimension_numbers<[1], [0], [0], [1], [0, 0, 1, 1], [], []>} : vector<48x128xbf16>, vector<128x32xbf16>, vector<48x32xf32> -> vector<48x32xf32>
    %c0_19 = arith.constant 0 : index
    %c0_20 = arith.constant 0 : index
    %40 = vector.load %arg7[%c0_19, %c0_20] : memref<1x32xf32, #tpu.memory_space<vmem>>, vector<1x32xf32>
    %41 = vector.broadcast %40 : vector<1x32xf32> to vector<48x32xf32>
    %42 = arith.addf %39, %41 : vector<48x32xf32>
    %43 = arith.addf %0, %42 : vector<48x32xf32>
    %c0_21 = arith.constant 0 : index
    %c0_22 = arith.constant 0 : index
    %44 = vector.load %arg8[%c0_21, %c0_22] : memref<48x32xf32, #tpu.memory_space<vmem>>, vector<48x32xf32>
    tpu.vector_store %arg8[%c0_21, %c0_22], %43 {strides = array<i32>} : memref<48x32xf32, #tpu.memory_space<vmem>>, vector<48x32xf32>,
    return
  }
  func.func @transform_0(%arg0: i32) -> (i32, i32) {
    %c0_i32 = arith.constant 0 : i32
    %c0_i32_0 = arith.constant 0 : i32
    return %arg0, %c0_i32 : i32, i32
  }
  func.func @transform_1(%arg0: i32) -> (i32, i32) {
    %c0_i32 = arith.constant 0 : i32
    %c0_i32_0 = arith.constant 0 : i32
    %c0_i32_1 = arith.constant 0 : i32
    return %c0_i32, %c0_i32_0 : i32, i32
  }
  func.func @transform_2(%arg0: i32) -> (i32, i32) {
    %c0_i32 = arith.constant 0 : i32
    %c0_i32_0 = arith.constant 0 : i32
    %c0_i32_1 = arith.constant 0 : i32
    return %c0_i32, %c0_i32_0 : i32, i32
  }
  func.func @transform_3(%arg0: i32) -> (i32, i32) {
    %c0_i32 = arith.constant 0 : i32
    %c0_i32_0 = arith.constant 0 : i32
    %c0_i32_1 = arith.constant 0 : i32
    return %c0_i32, %c0_i32_0 : i32, i32
  }
  func.func @transform_4(%arg0: i32) -> (i32, i32) {
    %c0_i32 = arith.constant 0 : i32
    %c0_i32_0 = arith.constant 0 : i32
    %c0_i32_1 = arith.constant 0 : i32
    return %c0_i32, %c0_i32_0 : i32, i32
  }
  func.func @transform_5(%arg0: i32) -> (i32, i32) {
    %c0_i32 = arith.constant 0 : i32
    %c0_i32_0 = arith.constant 0 : i32
    %c0_i32_1 = arith.constant 0 : i32
    return %c0_i32, %c0_i32_0 : i32, i32
  }
  func.func @transform_6(%arg0: i32) -> (i32, i32) {
    %c0_i32 = arith.constant 0 : i32
    %c0_i32_0 = arith.constant 0 : i32
    %c0_i32_1 = arith.constant 0 : i32
    return %c0_i32, %c0_i32_0 : i32, i32
  }
  func.func @transform_7(%arg0: i32) -> (i32, i32) {
    %c0_i32 = arith.constant 0 : i32
    %c0_i32_0 = arith.constant 0 : i32
    return %arg0, %c0_i32 : i32, i32
  }
}

module attributes {stable_mosaic.version = 11 : i64} {
  func.func @_attn_block_kernel(%arg0: i32, %arg1: memref<1x24x32xf32, #tpu.memory_space<vmem>>, %arg2: memref<1x32xf32, #tpu.memory_space<vmem>>, %arg3: memref<1x32xf32, #tpu.memory_space<vmem>>, %arg4: memref<32x96xbf16, #tpu.memory_space<vmem>>, %arg5: memref<1x96xf32, #tpu.memory_space<vmem>>, %arg6: memref<32x32xbf16, #tpu.memory_space<vmem>>, %arg7: memref<1x32xf32, #tpu.memory_space<vmem>>, %arg8: memref<1x24x32xf32, #tpu.memory_space<vmem>>) attributes {dimension_semantics = [#tpu.dimension_semantics<parallel>], iteration_bounds = array<i64: 2>, scalar_prefetch = 0 : i64, scratch_operands = 0 : i64, tpu.core_type = #tpu.core_type<tc>, window_params = [{transform_indices = @transform_0, window_bounds = array<i64: 1, 24, 32>}, {pipeline_mode = #tpu.pipeline_mode<synchronous>, transform_indices = @transform_1, window_bounds = array<i64: 1, 32>}, {pipeline_mode = #tpu.pipeline_mode<synchronous>, transform_indices = @transform_2, window_bounds = array<i64: 1, 32>}, {pipeline_mode = #tpu.pipeline_mode<synchronous>, transform_indices = @transform_3, window_bounds = array<i64: 32, 96>}, {pipeline_mode = #tpu.pipeline_mode<synchronous>, transform_indices = @transform_4, window_bounds = array<i64: 1, 96>}, {pipeline_mode = #tpu.pipeline_mode<synchronous>, transform_indices = @transform_5, window_bounds = array<i64: 32, 32>}, {pipeline_mode = #tpu.pipeline_mode<synchronous>, transform_indices = @transform_6, window_bounds = array<i64: 1, 32>}, {transform_indices = @transform_7, window_bounds = array<i64: 1, 24, 32>}]} {
    %c0 = arith.constant 0 : index
    %c0_0 = arith.constant 0 : index
    %c0_1 = arith.constant 0 : index
    %0 = vector.load %arg1[%c0, %c0_0, %c0_1] : memref<1x24x32xf32, #tpu.memory_space<vmem>>, vector<1x24x32xf32>
    %1 = vector.shape_cast %0 : vector<1x24x32xf32> to vector<24x32xf32>
    %c0_2 = arith.constant 0 : index
    %c0_3 = arith.constant 0 : index
    %2 = vector.load %arg2[%c0_2, %c0_3] : memref<1x32xf32, #tpu.memory_space<vmem>>, vector<1x32xf32>
    %c0_4 = arith.constant 0 : index
    %c0_5 = arith.constant 0 : index
    %3 = vector.load %arg3[%c0_4, %c0_5] : memref<1x32xf32, #tpu.memory_space<vmem>>, vector<1x32xf32>
    %cst = arith.constant dense<0.000000e+00> : vector<24xf32>
    %4 = vector.multi_reduction <add>, %1, %cst [1] : vector<24x32xf32> to vector<24xf32>
    %5 = vector.shape_cast %4 : vector<24xf32> to vector<24x1xf32>
    %cst_6 = arith.constant 3.200000e+01 : f32
    %6 = vector.broadcast %cst_6 : f32 to vector<24x1xf32>
    %7 = arith.divf %5, %6 : vector<24x1xf32>
    %8 = vector.broadcast %7 : vector<24x1xf32> to vector<24x32xf32>
    %9 = arith.subf %1, %8 : vector<24x32xf32>
    %10 = arith.mulf %9, %9 : vector<24x32xf32>
    %cst_7 = arith.constant dense<0.000000e+00> : vector<24xf32>
    %11 = vector.multi_reduction <add>, %10, %cst_7 [1] : vector<24x32xf32> to vector<24xf32>
    %12 = vector.shape_cast %11 : vector<24xf32> to vector<24x1xf32>
    %cst_8 = arith.constant 3.200000e+01 : f32
    %13 = vector.broadcast %cst_8 : f32 to vector<24x1xf32>
    %14 = arith.divf %12, %13 : vector<24x1xf32>
    %cst_9 = arith.constant 9.99999974E-6 : f32
    %15 = vector.broadcast %cst_9 : f32 to vector<24x1xf32>
    %16 = arith.addf %14, %15 : vector<24x1xf32>
    %17 = math.rsqrt %16 : vector<24x1xf32>
    %18 = vector.broadcast %17 : vector<24x1xf32> to vector<24x32xf32>
    %19 = arith.mulf %9, %18 : vector<24x32xf32>
    %20 = vector.broadcast %2 : vector<1x32xf32> to vector<24x32xf32>
    %21 = arith.mulf %19, %20 : vector<24x32xf32>
    %22 = vector.broadcast %3 : vector<1x32xf32> to vector<24x32xf32>
    %23 = arith.addf %21, %22 : vector<24x32xf32>
    %24 = arith.truncf %23 : vector<24x32xf32> to vector<24x32xbf16>
    %c0_10 = arith.constant 0 : index
    %c0_11 = arith.constant 0 : index
    %25 = vector.load %arg4[%c0_10, %c0_11] : memref<32x96xbf16, #tpu.memory_space<vmem>>, vector<32x96xbf16>
    %cst_12 = arith.constant dense<0.000000e+00> : vector<24x96xf32>
    %26 = tpu.matmul %24, %25, %cst_12 {dimension_numbers = #tpu.dot_dimension_numbers<[1], [0], [0], [1], [0, 0, 1, 1], [], []>} : vector<24x32xbf16>, vector<32x96xbf16>, vector<24x96xf32> -> vector<24x96xf32>
    %c0_13 = arith.constant 0 : index
    %c0_14 = arith.constant 0 : index
    %27 = vector.load %arg5[%c0_13, %c0_14] : memref<1x96xf32, #tpu.memory_space<vmem>>, vector<1x96xf32>
    %28 = vector.broadcast %27 : vector<1x96xf32> to vector<24x96xf32>
    %29 = arith.addf %26, %28 : vector<24x96xf32>
    %30 = tpu.iota {dimensions = array<i32: 1>} : vector<24x24xi32>
    %c17_i32 = arith.constant 17 : i32
    %31 = vector.broadcast %c17_i32 : i32 to vector<24x24xi32>
    %32 = arith.cmpi slt, %30, %31 : vector<24x24xi32>
    %33 = vector.extract_strided_slice %29 {offsets = [0, 0], sizes = [24, 8], strides = [1, 1]} : vector<24x96xf32> to vector<24x8xf32>
    %34 = vector.extract_strided_slice %29 {offsets = [0, 32], sizes = [24, 8], strides = [1, 1]} : vector<24x96xf32> to vector<24x8xf32>
    %35 = vector.extract_strided_slice %29 {offsets = [0, 64], sizes = [24, 8], strides = [1, 1]} : vector<24x96xf32> to vector<24x8xf32>
    %36 = arith.truncf %33 : vector<24x8xf32> to vector<24x8xbf16>
    %37 = arith.truncf %34 : vector<24x8xf32> to vector<24x8xbf16>
    %cst_15 = arith.constant dense<0.000000e+00> : vector<24x24xf32>
    %38 = tpu.matmul %36, %37, %cst_15 {dimension_numbers = #tpu.dot_dimension_numbers<[1], [1], [0], [0], [0, 0, 1, 0], [], []>} : vector<24x8xbf16>, vector<24x8xbf16>, vector<24x24xf32> -> vector<24x24xf32>
    %cst_16 = arith.constant 0.353553385 : f32
    %39 = vector.broadcast %cst_16 : f32 to vector<24x24xf32>
    %40 = arith.mulf %38, %39 : vector<24x24xf32>
    %cst_17 = arith.constant -1.000000e+30 : f32
    %41 = vector.broadcast %cst_17 : f32 to vector<24x24xf32>
    %42 = arith.select %32, %40, %41 : vector<24x24xi1>, vector<24x24xf32>
    %cst_18 = arith.constant dense<0xFF800000> : vector<24xf32>
    %43 = vector.multi_reduction <maximumf>, %42, %cst_18 [1] : vector<24x24xf32> to vector<24xf32>
    %44 = vector.shape_cast %43 : vector<24xf32> to vector<24x1xf32>
    %45 = vector.broadcast %44 : vector<24x1xf32> to vector<24x24xf32>
    %46 = arith.subf %42, %45 : vector<24x24xf32>
    %47 = math.exp %46 : vector<24x24xf32>
    %cst_19 = arith.constant dense<0.000000e+00> : vector<24xf32>
    %48 = vector.multi_reduction <add>, %47, %cst_19 [1] : vector<24x24xf32> to vector<24xf32>
    %49 = vector.shape_cast %48 : vector<24xf32> to vector<24x1xf32>
    %50 = tpu.reciprocal %49 {approx = true} : vector<24x1xf32> -> vector<24x1xf32>
    %51 = vector.broadcast %50 : vector<24x1xf32> to vector<24x24xf32>
    %52 = arith.mulf %47, %51 : vector<24x24xf32>
    %53 = arith.truncf %52 : vector<24x24xf32> to vector<24x24xbf16>
    %54 = arith.truncf %35 : vector<24x8xf32> to vector<24x8xbf16>
    %cst_20 = arith.constant dense<0.000000e+00> : vector<24x8xf32>
    %55 = tpu.matmul %53, %54, %cst_20 {dimension_numbers = #tpu.dot_dimension_numbers<[1], [0], [0], [1], [0, 0, 1, 1], [], []>} : vector<24x24xbf16>, vector<24x8xbf16>, vector<24x8xf32> -> vector<24x8xf32>
    %56 = vector.extract_strided_slice %29 {offsets = [0, 8], sizes = [24, 8], strides = [1, 1]} : vector<24x96xf32> to vector<24x8xf32>
    %57 = vector.extract_strided_slice %29 {offsets = [0, 40], sizes = [24, 8], strides = [1, 1]} : vector<24x96xf32> to vector<24x8xf32>
    %58 = vector.extract_strided_slice %29 {offsets = [0, 72], sizes = [24, 8], strides = [1, 1]} : vector<24x96xf32> to vector<24x8xf32>
    %59 = arith.truncf %56 : vector<24x8xf32> to vector<24x8xbf16>
    %60 = arith.truncf %57 : vector<24x8xf32> to vector<24x8xbf16>
    %cst_21 = arith.constant dense<0.000000e+00> : vector<24x24xf32>
    %61 = tpu.matmul %59, %60, %cst_21 {dimension_numbers = #tpu.dot_dimension_numbers<[1], [1], [0], [0], [0, 0, 1, 0], [], []>} : vector<24x8xbf16>, vector<24x8xbf16>, vector<24x24xf32> -> vector<24x24xf32>
    %cst_22 = arith.constant 0.353553385 : f32
    %62 = vector.broadcast %cst_22 : f32 to vector<24x24xf32>
    %63 = arith.mulf %61, %62 : vector<24x24xf32>
    %cst_23 = arith.constant -1.000000e+30 : f32
    %64 = vector.broadcast %cst_23 : f32 to vector<24x24xf32>
    %65 = arith.select %32, %63, %64 : vector<24x24xi1>, vector<24x24xf32>
    %cst_24 = arith.constant dense<0xFF800000> : vector<24xf32>
    %66 = vector.multi_reduction <maximumf>, %65, %cst_24 [1] : vector<24x24xf32> to vector<24xf32>
    %67 = vector.shape_cast %66 : vector<24xf32> to vector<24x1xf32>
    %68 = vector.broadcast %67 : vector<24x1xf32> to vector<24x24xf32>
    %69 = arith.subf %65, %68 : vector<24x24xf32>
    %70 = math.exp %69 : vector<24x24xf32>
    %cst_25 = arith.constant dense<0.000000e+00> : vector<24xf32>
    %71 = vector.multi_reduction <add>, %70, %cst_25 [1] : vector<24x24xf32> to vector<24xf32>
    %72 = vector.shape_cast %71 : vector<24xf32> to vector<24x1xf32>
    %73 = tpu.reciprocal %72 {approx = true} : vector<24x1xf32> -> vector<24x1xf32>
    %74 = vector.broadcast %73 : vector<24x1xf32> to vector<24x24xf32>
    %75 = arith.mulf %70, %74 : vector<24x24xf32>
    %76 = arith.truncf %75 : vector<24x24xf32> to vector<24x24xbf16>
    %77 = arith.truncf %58 : vector<24x8xf32> to vector<24x8xbf16>
    %cst_26 = arith.constant dense<0.000000e+00> : vector<24x8xf32>
    %78 = tpu.matmul %76, %77, %cst_26 {dimension_numbers = #tpu.dot_dimension_numbers<[1], [0], [0], [1], [0, 0, 1, 1], [], []>} : vector<24x24xbf16>, vector<24x8xbf16>, vector<24x8xf32> -> vector<24x8xf32>
    %79 = vector.extract_strided_slice %29 {offsets = [0, 16], sizes = [24, 8], strides = [1, 1]} : vector<24x96xf32> to vector<24x8xf32>
    %80 = vector.extract_strided_slice %29 {offsets = [0, 48], sizes = [24, 8], strides = [1, 1]} : vector<24x96xf32> to vector<24x8xf32>
    %81 = vector.extract_strided_slice %29 {offsets = [0, 80], sizes = [24, 8], strides = [1, 1]} : vector<24x96xf32> to vector<24x8xf32>
    %82 = arith.truncf %79 : vector<24x8xf32> to vector<24x8xbf16>
    %83 = arith.truncf %80 : vector<24x8xf32> to vector<24x8xbf16>
    %cst_27 = arith.constant dense<0.000000e+00> : vector<24x24xf32>
    %84 = tpu.matmul %82, %83, %cst_27 {dimension_numbers = #tpu.dot_dimension_numbers<[1], [1], [0], [0], [0, 0, 1, 0], [], []>} : vector<24x8xbf16>, vector<24x8xbf16>, vector<24x24xf32> -> vector<24x24xf32>
    %cst_28 = arith.constant 0.353553385 : f32
    %85 = vector.broadcast %cst_28 : f32 to vector<24x24xf32>
    %86 = arith.mulf %84, %85 : vector<24x24xf32>
    %cst_29 = arith.constant -1.000000e+30 : f32
    %87 = vector.broadcast %cst_29 : f32 to vector<24x24xf32>
    %88 = arith.select %32, %86, %87 : vector<24x24xi1>, vector<24x24xf32>
    %cst_30 = arith.constant dense<0xFF800000> : vector<24xf32>
    %89 = vector.multi_reduction <maximumf>, %88, %cst_30 [1] : vector<24x24xf32> to vector<24xf32>
    %90 = vector.shape_cast %89 : vector<24xf32> to vector<24x1xf32>
    %91 = vector.broadcast %90 : vector<24x1xf32> to vector<24x24xf32>
    %92 = arith.subf %88, %91 : vector<24x24xf32>
    %93 = math.exp %92 : vector<24x24xf32>
    %cst_31 = arith.constant dense<0.000000e+00> : vector<24xf32>
    %94 = vector.multi_reduction <add>, %93, %cst_31 [1] : vector<24x24xf32> to vector<24xf32>
    %95 = vector.shape_cast %94 : vector<24xf32> to vector<24x1xf32>
    %96 = tpu.reciprocal %95 {approx = true} : vector<24x1xf32> -> vector<24x1xf32>
    %97 = vector.broadcast %96 : vector<24x1xf32> to vector<24x24xf32>
    %98 = arith.mulf %93, %97 : vector<24x24xf32>
    %99 = arith.truncf %98 : vector<24x24xf32> to vector<24x24xbf16>
    %100 = arith.truncf %81 : vector<24x8xf32> to vector<24x8xbf16>
    %cst_32 = arith.constant dense<0.000000e+00> : vector<24x8xf32>
    %101 = tpu.matmul %99, %100, %cst_32 {dimension_numbers = #tpu.dot_dimension_numbers<[1], [0], [0], [1], [0, 0, 1, 1], [], []>} : vector<24x24xbf16>, vector<24x8xbf16>, vector<24x8xf32> -> vector<24x8xf32>
    %102 = vector.extract_strided_slice %29 {offsets = [0, 24], sizes = [24, 8], strides = [1, 1]} : vector<24x96xf32> to vector<24x8xf32>
    %103 = vector.extract_strided_slice %29 {offsets = [0, 56], sizes = [24, 8], strides = [1, 1]} : vector<24x96xf32> to vector<24x8xf32>
    %104 = vector.extract_strided_slice %29 {offsets = [0, 88], sizes = [24, 8], strides = [1, 1]} : vector<24x96xf32> to vector<24x8xf32>
    %105 = arith.truncf %102 : vector<24x8xf32> to vector<24x8xbf16>
    %106 = arith.truncf %103 : vector<24x8xf32> to vector<24x8xbf16>
    %cst_33 = arith.constant dense<0.000000e+00> : vector<24x24xf32>
    %107 = tpu.matmul %105, %106, %cst_33 {dimension_numbers = #tpu.dot_dimension_numbers<[1], [1], [0], [0], [0, 0, 1, 0], [], []>} : vector<24x8xbf16>, vector<24x8xbf16>, vector<24x24xf32> -> vector<24x24xf32>
    %cst_34 = arith.constant 0.353553385 : f32
    %108 = vector.broadcast %cst_34 : f32 to vector<24x24xf32>
    %109 = arith.mulf %107, %108 : vector<24x24xf32>
    %cst_35 = arith.constant -1.000000e+30 : f32
    %110 = vector.broadcast %cst_35 : f32 to vector<24x24xf32>
    %111 = arith.select %32, %109, %110 : vector<24x24xi1>, vector<24x24xf32>
    %cst_36 = arith.constant dense<0xFF800000> : vector<24xf32>
    %112 = vector.multi_reduction <maximumf>, %111, %cst_36 [1] : vector<24x24xf32> to vector<24xf32>
    %113 = vector.shape_cast %112 : vector<24xf32> to vector<24x1xf32>
    %114 = vector.broadcast %113 : vector<24x1xf32> to vector<24x24xf32>
    %115 = arith.subf %111, %114 : vector<24x24xf32>
    %116 = math.exp %115 : vector<24x24xf32>
    %cst_37 = arith.constant dense<0.000000e+00> : vector<24xf32>
    %117 = vector.multi_reduction <add>, %116, %cst_37 [1] : vector<24x24xf32> to vector<24xf32>
    %118 = vector.shape_cast %117 : vector<24xf32> to vector<24x1xf32>
    %119 = tpu.reciprocal %118 {approx = true} : vector<24x1xf32> -> vector<24x1xf32>
    %120 = vector.broadcast %119 : vector<24x1xf32> to vector<24x24xf32>
    %121 = arith.mulf %116, %120 : vector<24x24xf32>
    %122 = arith.truncf %121 : vector<24x24xf32> to vector<24x24xbf16>
    %123 = arith.truncf %104 : vector<24x8xf32> to vector<24x8xbf16>
    %cst_38 = arith.constant dense<0.000000e+00> : vector<24x8xf32>
    %124 = tpu.matmul %122, %123, %cst_38 {dimension_numbers = #tpu.dot_dimension_numbers<[1], [0], [0], [1], [0, 0, 1, 1], [], []>} : vector<24x24xbf16>, vector<24x8xbf16>, vector<24x8xf32> -> vector<24x8xf32>
    %125 = tpu.concatenate %55, %78, %101, %124 in 1 : vector<24x8xf32>, vector<24x8xf32>, vector<24x8xf32>, vector<24x8xf32> -> vector<24x32xf32>
    %126 = arith.truncf %125 : vector<24x32xf32> to vector<24x32xbf16>
    %c0_39 = arith.constant 0 : index
    %c0_40 = arith.constant 0 : index
    %127 = vector.load %arg6[%c0_39, %c0_40] : memref<32x32xbf16, #tpu.memory_space<vmem>>, vector<32x32xbf16>
    %cst_41 = arith.constant dense<0.000000e+00> : vector<24x32xf32>
    %128 = tpu.matmul %126, %127, %cst_41 {dimension_numbers = #tpu.dot_dimension_numbers<[1], [0], [0], [1], [0, 0, 1, 1], [], []>} : vector<24x32xbf16>, vector<32x32xbf16>, vector<24x32xf32> -> vector<24x32xf32>
    %c0_42 = arith.constant 0 : index
    %c0_43 = arith.constant 0 : index
    %129 = vector.load %arg7[%c0_42, %c0_43] : memref<1x32xf32, #tpu.memory_space<vmem>>, vector<1x32xf32>
    %130 = vector.broadcast %129 : vector<1x32xf32> to vector<24x32xf32>
    %131 = arith.addf %128, %130 : vector<24x32xf32>
    %132 = arith.addf %1, %131 : vector<24x32xf32>
    %c0_44 = arith.constant 0 : index
    %c0_45 = arith.constant 0 : index
    %c0_46 = arith.constant 0 : index
    %133 = vector.load %arg8[%c0_44, %c0_45, %c0_46] : memref<1x24x32xf32, #tpu.memory_space<vmem>>, vector<1x24x32xf32>
    %134 = vector.shape_cast %133 : vector<1x24x32xf32> to vector<24x32xf32>
    %135 = vector.shape_cast %132 : vector<24x32xf32> to vector<1x24x32xf32>
    tpu.vector_store %arg8[%c0_44, %c0_45, %c0_46], %135 {strides = array<i32>} : memref<1x24x32xf32, #tpu.memory_space<vmem>>, vector<1x24x32xf32>,
    return
  }
  func.func @transform_0(%arg0: i32) -> (i32, i32, i32) {
    %c0_i32 = arith.constant 0 : i32
    %c0_i32_0 = arith.constant 0 : i32
    %c0_i32_1 = arith.constant 0 : i32
    return %arg0, %c0_i32, %c0_i32_0 : i32, i32, i32
  }
  func.func @transform_1(%arg0: i32) -> (i32, i32) {
    %c0_i32 = arith.constant 0 : i32
    %c0_i32_0 = arith.constant 0 : i32
    %c0_i32_1 = arith.constant 0 : i32
    return %c0_i32, %c0_i32_0 : i32, i32
  }
  func.func @transform_2(%arg0: i32) -> (i32, i32) {
    %c0_i32 = arith.constant 0 : i32
    %c0_i32_0 = arith.constant 0 : i32
    %c0_i32_1 = arith.constant 0 : i32
    return %c0_i32, %c0_i32_0 : i32, i32
  }
  func.func @transform_3(%arg0: i32) -> (i32, i32) {
    %c0_i32 = arith.constant 0 : i32
    %c0_i32_0 = arith.constant 0 : i32
    %c0_i32_1 = arith.constant 0 : i32
    return %c0_i32, %c0_i32_0 : i32, i32
  }
  func.func @transform_4(%arg0: i32) -> (i32, i32) {
    %c0_i32 = arith.constant 0 : i32
    %c0_i32_0 = arith.constant 0 : i32
    %c0_i32_1 = arith.constant 0 : i32
    return %c0_i32, %c0_i32_0 : i32, i32
  }
  func.func @transform_5(%arg0: i32) -> (i32, i32) {
    %c0_i32 = arith.constant 0 : i32
    %c0_i32_0 = arith.constant 0 : i32
    %c0_i32_1 = arith.constant 0 : i32
    return %c0_i32, %c0_i32_0 : i32, i32
  }
  func.func @transform_6(%arg0: i32) -> (i32, i32) {
    %c0_i32 = arith.constant 0 : i32
    %c0_i32_0 = arith.constant 0 : i32
    %c0_i32_1 = arith.constant 0 : i32
    return %c0_i32, %c0_i32_0 : i32, i32
  }
  func.func @transform_7(%arg0: i32) -> (i32, i32, i32) {
    %c0_i32 = arith.constant 0 : i32
    %c0_i32_0 = arith.constant 0 : i32
    %c0_i32_1 = arith.constant 0 : i32
    return %arg0, %c0_i32, %c0_i32_0 : i32, i32, i32
  }
}

module attributes {stable_mosaic.version = 11 : i64} {
  func.func @_ln_linear_kernel(%arg0: memref<2x32xf32, #tpu.memory_space<vmem>>, %arg1: memref<1x32xf32, #tpu.memory_space<vmem>>, %arg2: memref<1x32xf32, #tpu.memory_space<vmem>>, %arg3: memref<32x1xbf16, #tpu.memory_space<vmem>>, %arg4: memref<1x1xf32, #tpu.memory_space<vmem>>, %arg5: memref<2x1xf32, #tpu.memory_space<vmem>>) attributes {dimension_semantics = [], scalar_prefetch = 0 : i64, scratch_operands = 0 : i64, tpu.core_type = #tpu.core_type<tc>} {
    %c0 = arith.constant 0 : index
    %c0_0 = arith.constant 0 : index
    %0 = vector.load %arg0[%c0, %c0_0] : memref<2x32xf32, #tpu.memory_space<vmem>>, vector<2x32xf32>
    %c0_1 = arith.constant 0 : index
    %c0_2 = arith.constant 0 : index
    %1 = vector.load %arg1[%c0_1, %c0_2] : memref<1x32xf32, #tpu.memory_space<vmem>>, vector<1x32xf32>
    %c0_3 = arith.constant 0 : index
    %c0_4 = arith.constant 0 : index
    %2 = vector.load %arg2[%c0_3, %c0_4] : memref<1x32xf32, #tpu.memory_space<vmem>>, vector<1x32xf32>
    %cst = arith.constant dense<0.000000e+00> : vector<2xf32>
    %3 = vector.multi_reduction <add>, %0, %cst [1] : vector<2x32xf32> to vector<2xf32>
    %4 = vector.shape_cast %3 : vector<2xf32> to vector<2x1xf32>
    %cst_5 = arith.constant 3.200000e+01 : f32
    %5 = vector.broadcast %cst_5 : f32 to vector<2x1xf32>
    %6 = arith.divf %4, %5 : vector<2x1xf32>
    %7 = vector.broadcast %6 : vector<2x1xf32> to vector<2x32xf32>
    %8 = arith.subf %0, %7 : vector<2x32xf32>
    %9 = arith.mulf %8, %8 : vector<2x32xf32>
    %cst_6 = arith.constant dense<0.000000e+00> : vector<2xf32>
    %10 = vector.multi_reduction <add>, %9, %cst_6 [1] : vector<2x32xf32> to vector<2xf32>
    %11 = vector.shape_cast %10 : vector<2xf32> to vector<2x1xf32>
    %cst_7 = arith.constant 3.200000e+01 : f32
    %12 = vector.broadcast %cst_7 : f32 to vector<2x1xf32>
    %13 = arith.divf %11, %12 : vector<2x1xf32>
    %cst_8 = arith.constant 9.99999974E-6 : f32
    %14 = vector.broadcast %cst_8 : f32 to vector<2x1xf32>
    %15 = arith.addf %13, %14 : vector<2x1xf32>
    %16 = math.rsqrt %15 : vector<2x1xf32>
    %17 = vector.broadcast %16 : vector<2x1xf32> to vector<2x32xf32>
    %18 = arith.mulf %8, %17 : vector<2x32xf32>
    %19 = vector.broadcast %1 : vector<1x32xf32> to vector<2x32xf32>
    %20 = arith.mulf %18, %19 : vector<2x32xf32>
    %21 = vector.broadcast %2 : vector<1x32xf32> to vector<2x32xf32>
    %22 = arith.addf %20, %21 : vector<2x32xf32>
    %23 = arith.truncf %22 : vector<2x32xf32> to vector<2x32xbf16>
    %c0_9 = arith.constant 0 : index
    %c0_10 = arith.constant 0 : index
    %24 = vector.load %arg3[%c0_9, %c0_10] : memref<32x1xbf16, #tpu.memory_space<vmem>>, vector<32x1xbf16>
    %cst_11 = arith.constant dense<0.000000e+00> : vector<2x1xf32>
    %25 = tpu.matmul %23, %24, %cst_11 {dimension_numbers = #tpu.dot_dimension_numbers<[1], [0], [0], [1], [0, 0, 1, 1], [], []>} : vector<2x32xbf16>, vector<32x1xbf16>, vector<2x1xf32> -> vector<2x1xf32>
    %c0_12 = arith.constant 0 : index
    %c0_13 = arith.constant 0 : index
    %26 = vector.load %arg4[%c0_12, %c0_13] : memref<1x1xf32, #tpu.memory_space<vmem>>, vector<1x1xf32>
    %27 = vector.broadcast %26 : vector<1x1xf32> to vector<2x1xf32>
    %28 = arith.addf %25, %27 : vector<2x1xf32>
    %c0_14 = arith.constant 0 : index
    %c0_15 = arith.constant 0 : index
    %29 = vector.load %arg5[%c0_14, %c0_15] : memref<2x1xf32, #tpu.memory_space<vmem>>, vector<2x1xf32>
    tpu.vector_store %arg5[%c0_14, %c0_15], %28 {strides = array<i32>} : memref<2x1xf32, #tpu.memory_space<vmem>>, vector<2x1xf32>,
    return
  }
}

</mosaic_0001>

<llo_original>
// kernel: clip_penultimate_forward.7
$region0: #{clip_penultimate_forward.7}
  #allocation0 [shape = 'u32[]', space=smem, size = 0x4, offset = 0x4, fixed_abs, tag = 'smem constant byte address 0x4 - core index']
  #allocation1 [shape = 'u32[144,128]{1,0:T(1,128)}', space=vmem, size = 0x12000, scoped, tag = 'internal scratch']
  %s0 = inlined_call_operand.vmem [shape: f32[32,48], index: 0, kind: input, shape index: {}]
  %s1 = inlined_call_operand.vmem [shape: bf16[48,32], index: 1, kind: input, shape index: {}]
  %s2 = inlined_call_operand.vmem [shape: f32[1,32], index: 2, kind: input, shape index: {}]
  %s3 = inlined_call_operand.vmem [shape: f32[32,32], index: 3, kind: output, shape index: {}]
  %s4 = sld [smem:[#allocation0]]
  $region22: #{clip_penultimate_forward.7} parent=0
    _
  %s6 = ssub.s32 1, %s4
  %s7 = scalar_select 0, %s6, %s4
  // Predicated region
  $region2: #{clip_penultimate_forward.7} parent=0 // pred_check
    _
  $region3: #{clip_penultimate_forward.7} parent=0 // pred_check_branch
    %9 = sbr.rel (0) target = $region5
  $region4: #{clip_penultimate_forward.7} parent=0 // pred_region
    _
  $region5: #{clip_penultimate_forward.7} parent=0 // pred_fallthru
    _
  // Predicated region
  $region6: #{clip_penultimate_forward.7} parent=0 // pred_check
    _
  $region7: #{clip_penultimate_forward.7} parent=0 // pred_check_branch
    %11 = sbr.rel (0) target = $region9
  $region8: #{clip_penultimate_forward.7} parent=0 // pred_region
    _
  $region9: #{clip_penultimate_forward.7} parent=0 // pred_fallthru
    _
  // Predicated region
  $region10: #{clip_penultimate_forward.7} parent=0 // pred_check
    _
  $region11: #{clip_penultimate_forward.7} parent=0 // pred_check_branch
    %13 = sbr.rel (0) target = $region13
  $region12: #{clip_penultimate_forward.7} parent=0 // pred_region
    _
  $region13: #{clip_penultimate_forward.7} parent=0 // pred_fallthru
    _
  %v15 = vld [vmem:[%s0] sm:$0xff]
  %v16 = vld [vmem:[%s0 + $0x8] sm:$0xff]
  %v17 = vld [vmem:[%s0 + $0x10] sm:$0xff]
  %v18 = vld [vmem:[%s0 + $0x18] sm:$0xff]
  %v19 = vpack.c.bf16 %v16, %v15
  %v20 = vpack.c.bf16 %v18, %v17
  %v21 = vld [vmem:[%s1] sm:$0xf]
  %v22 = vld [vmem:[%s1 + $0x4] sm:$0xf]
  %v23 = vld [vmem:[%s1 + $0x8] sm:$0xf]
  %v24 = vld [vmem:[%s1 + $0xc] sm:$0xf]
  %v25 = vld [vmem:[%s1 + $0x10] sm:$0xf]
  %v26 = vld [vmem:[%s1 + $0x14] sm:$0xf]
  %v27 = vld [vmem:[%s2] sm:$0x1]
  %v29 = vlaneseq
  %v30 = vshrl.u32 %v29, 7
  %v31 = vsub.s32 0, %v30
  %v32 = vrot.slane %v27, %v31
  %v40 = vunpack.c.l.b16 %v21
  %v41 = vunpack.c.l.b16 %v22
  %v42 = vunpack.c.l.b16 %v23
  %v43 = vunpack.c.l.b16 %v24
  %v44 = vunpack.c.l.b16 %v25
  %v45 = vunpack.c.l.b16 %v26
  %v46 = vpack.c.b16 %v41, %v40
  %v47 = vpack.c.b16 %v43, %v42
  %v48 = vpack.c.b16 %v45, %v44
  %vm52 = vcmask 392192
  %v54 = vsel %vm52, %v19, 0
  %v57 = vsel %vm52, %v20, 0
  %59 = vmatprep.subr.bf16.mxu0 0
  %60 = vmatpush1.bf16.msra.mxu0 %v46
  %61 = vmatprep.subr.bf16.mxu0 0
  %62 = vmatpush1.bf16.msra.mxu0 %v47
  %63 = vmatprep.subr.bf16.mxu0 0
  %64 = vmatpush1.bf16.msra.mxu0 %v48
  %65 = vmatprep.subr.bf16.mxu0 0
  %66 = vmatpush1.bf16.msra.mxu0 0
  %67 = vmatprep.subr.bf16.mxu0 0
  %68 = vmatpush1.bf16.msra.mxu0 0
  %69 = vmatprep.subr.bf16.mxu0 0
  %70 = vmatpush1.bf16.msra.mxu0 0
  %71 = vmatprep.subr.bf16.mxu0 0
  %72 = vmatpush1.bf16.msra.mxu0 0
  %73 = vmatprep.subr.bf16.mxu0 0
  %74 = vmatpush1.bf16.msra.mxu0 0
  %75 = vmatprep.subr.bf16.mxu0 0
  %76 = vmatpush1.bf16.msra.mxu0 0
  %77 = vmatprep.subr.bf16.mxu0 0
  %78 = vmatpush1.bf16.msra.mxu0 0
  %79 = vmatprep.subr.bf16.mxu0 0
  %80 = vmatpush1.bf16.msra.mxu0 0
  %81 = vmatprep.subr.bf16.mxu0 0
  %82 = vmatpush1.bf16.msra.mxu0 0
  %83 = vmatprep.subr.bf16.mxu0 0
  %84 = vmatpush1.bf16.msra.mxu0 0
  %85 = vmatprep.subr.bf16.mxu0 0
  %86 = vmatpush1.bf16.msra.mxu0 0
  %87 = vmatprep.subr.bf16.mxu0 0
  %88 = vmatpush1.bf16.msra.mxu0 0
  %89 = vmatprep.subr.bf16.mxu0 0
  %90 = vmatpush1.bf16.msra.mxu0 0
  %91 = vmatprep.mubr.bf16.mxu0 0
  %92 = vmatmul.mubr.bf16.gmra.mrb[0].mxu0 %v54
  %v93 = vpop.f32.mrb[0].mxu0
  %v94 = vadd.f32 %v32, %v93
  %v95 = vpop.f32.mrb[0].mxu0
  %v96 = vpop.f32.mrb[0].mxu0
  %v97 = vadd.f32 %v32, %v96
  %v98 = vpop.f32.mrb[0].mxu0
  %99 = vmatprep.mubr.bf16.mxu0 0
  %100 = vmatmul.mubr.bf16.gmra.mrb[0].mxu0 %v57
  %v101 = vpop.f32.mrb[0].mxu0
  %v102 = vadd.f32 %v32, %v101
  %v103 = vpop.f32.mrb[0].mxu0
  %v104 = vpop.f32.mrb[0].mxu0
  %v105 = vadd.f32 %v32, %v104
  %v106 = vpop.f32.mrb[0].mxu0
  %107 = vdwg.mxu0
  %vm108 = vcmask 261120
  %109 = vst.msk [vmem:[%s3] sm:$0xff] %vm108, %v94
  %110 = vst.msk [vmem:[%s3 + $0x8] sm:$0xff] %vm108, %v97
  %111 = vst.msk [vmem:[%s3 + $0x10] sm:$0xff] %vm108, %v102
  %112 = vst.msk [vmem:[%s3 + $0x18] sm:$0xff] %vm108, %v105
  // Predicated region
  $region14: #{clip_penultimate_forward.7} parent=0 // pred_check
    _
  $region15: #{clip_penultimate_forward.7} parent=0 // pred_check_branch
    %114 = sbr.rel (0) target = $region17
  $region16: #{clip_penultimate_forward.7} parent=0 // pred_region
    _
  $region17: #{clip_penultimate_forward.7} parent=0 // pred_fallthru
    _
  // Predicated region
  $region18: #{clip_penultimate_forward.7} parent=0 // pred_check
    _
  $region19: #{clip_penultimate_forward.7} parent=0 // pred_check_branch
    %116 = sbr.rel (0) target = $region21
  $region20: #{clip_penultimate_forward.7} parent=0 // pred_region
    _
  $region21: #{clip_penultimate_forward.7} parent=0 // pred_fallthru
    _

// kernel: clip_penultimate_forward.8
$region0: #{clip_penultimate_forward.8}
  #allocation0 [shape = 'u32[]', space=smem, size = 0x4, offset = 0x4, fixed_abs, tag = 'smem constant byte address 0x4 - core index']
  #allocation1 [shape = 'u32[144,128]{1,0:T(1,128)}', space=vmem, size = 0x12000, scoped, tag = 'internal scratch']
  %s0 = inlined_call_operand.vmem [shape: f32[48,32], index: 0, kind: input, shape index: {}]
  %s1 = inlined_call_operand.vmem [shape: f32[1,32], index: 1, kind: input, shape index: {}]
  %s2 = inlined_call_operand.vmem [shape: f32[1,32], index: 2, kind: input, shape index: {}]
  %s3 = inlined_call_operand.vmem [shape: f32[48,32], index: 3, kind: output, shape index: {}]
  %s4 = sld [smem:[#allocation0]]
  $region22: #{clip_penultimate_forward.8} parent=0
    _
  %s6 = ssub.s32 1, %s4
  %s7 = scalar_select 0, %s6, %s4
  // Predicated region
  $region2: #{clip_penultimate_forward.8} parent=0 // pred_check
    _
  $region3: #{clip_penultimate_forward.8} parent=0 // pred_check_branch
    %9 = sbr.rel (0) target = $region5
  $region4: #{clip_penultimate_forward.8} parent=0 // pred_region
    _
  $region5: #{clip_penultimate_forward.8} parent=0 // pred_fallthru
    _
  // Predicated region
  $region6: #{clip_penultimate_forward.8} parent=0 // pred_check
    _
  $region7: #{clip_penultimate_forward.8} parent=0 // pred_check_branch
    %11 = sbr.rel (0) target = $region9
  $region8: #{clip_penultimate_forward.8} parent=0 // pred_region
    _
  $region9: #{clip_penultimate_forward.8} parent=0 // pred_fallthru
    _
  // Predicated region
  $region10: #{clip_penultimate_forward.8} parent=0 // pred_check
    _
  $region11: #{clip_penultimate_forward.8} parent=0 // pred_check_branch
    %13 = sbr.rel (0) target = $region13
  $region12: #{clip_penultimate_forward.8} parent=0 // pred_region
    _
  $region13: #{clip_penultimate_forward.8} parent=0 // pred_fallthru
    _
  %v14 = vld [vmem:[%s0] sm:$0xff]
  %v15 = vld [vmem:[%s0 + $0x8] sm:$0xff]
  %v16 = vld [vmem:[%s0 + $0x10] sm:$0xff]
  %v17 = vld [vmem:[%s0 + $0x18] sm:$0xff]
  %v18 = vld [vmem:[%s0 + $0x20] sm:$0xff]
  %v19 = vld [vmem:[%s0 + $0x28] sm:$0xff]
  %v20 = vld [vmem:[%s1] sm:$0x1]
  %v21 = vld [vmem:[%s2] sm:$0x1]
  %vm22 = vcmask 261120
  %v23 = vsel %vm22, %v14, 0.0
  %24 = vadd.xlane.f32.xlu0 %v23
  %v25 = vpop.xlane.xlu0 %24
  %v26 = vsel %vm22, %v15, 0.0
  %27 = vadd.xlane.f32.xlu0 %v26
  %v28 = vpop.xlane.xlu0 %27
  %v29 = vsel %vm22, %v16, 0.0
  %30 = vadd.xlane.f32.xlu0 %v29
  %v31 = vpop.xlane.xlu0 %30
  %v32 = vsel %vm22, %v17, 0.0
  %33 = vadd.xlane.f32.xlu0 %v32
  %v34 = vpop.xlane.xlu0 %33
  %v35 = vsel %vm22, %v18, 0.0
  %36 = vadd.xlane.f32.xlu0 %v35
  %v37 = vpop.xlane.xlu0 %36
  %v38 = vsel %vm22, %v19, 0.0
  %39 = vadd.xlane.f32.xlu0 %v38
  %v40 = vpop.xlane.xlu0 %39
  %v41 = vrcp.pop 32.0
  %v42 = vmul.f32 %v25, %v41
  %v43 = vmul.f32 %v28, %v41
  %v44 = vmul.f32 %v31, %v41
  %v45 = vmul.f32 %v34, %v41
  %v46 = vmul.f32 %v37, %v41
  %v47 = vmul.f32 %v40, %v41
  %v48 = vsub.f32 %v14, %v42
  %v49 = vsub.f32 %v15, %v43
  %v50 = vsub.f32 %v16, %v44
  %v51 = vsub.f32 %v17, %v45
  %v52 = vsub.f32 %v18, %v46
  %v53 = vsub.f32 %v19, %v47
  %v54 = vmul.f32 %v48, %v48
  %v55 = vmul.f32 %v49, %v49
  %v56 = vmul.f32 %v50, %v50
  %v57 = vmul.f32 %v51, %v51
  %v58 = vmul.f32 %v52, %v52
  %v59 = vmul.f32 %v53, %v53
  %v60 = vsel %vm22, %v54, 0.0
  %61 = vadd.xlane.f32.xlu0 %v60
  %v62 = vpop.xlane.xlu0 %61
  %v63 = vsel %vm22, %v55, 0.0
  %64 = vadd.xlane.f32.xlu0 %v63
  %v65 = vpop.xlane.xlu0 %64
  %v66 = vsel %vm22, %v56, 0.0
  %67 = vadd.xlane.f32.xlu0 %v66
  %v68 = vpop.xlane.xlu0 %67
  %v69 = vsel %vm22, %v57, 0.0
  %70 = vadd.xlane.f32.xlu0 %v69
  %v71 = vpop.xlane.xlu0 %70
  %v72 = vsel %vm22, %v58, 0.0
  %73 = vadd.xlane.f32.xlu0 %v72
  %v74 = vpop.xlane.xlu0 %73
  %v75 = vsel %vm22, %v59, 0.0
  %76 = vadd.xlane.f32.xlu0 %v75
  %v77 = vpop.xlane.xlu0 %76
  %v78 = vmul.f32 %v62, %v41
  %v79 = vmul.f32 %v65, %v41
  %v80 = vmul.f32 %v68, %v41
  %v81 = vmul.f32 %v71, %v41
  %v82 = vmul.f32 %v74, %v41
  %v83 = vmul.f32 %v77, %v41
  %v84 = vadd.f32 %v78, 1e-05
  %v85 = vadd.f32 %v79, 1e-05
  %v86 = vadd.f32 %v80, 1e-05
  %v87 = vadd.f32 %v81, 1e-05
  %v88 = vadd.f32 %v82, 1e-05
  %v89 = vadd.f32 %v83, 1e-05
  %v90 = vrsqrt.pop %v84
  %v91 = vrsqrt.pop %v85
  %v92 = vrsqrt.pop %v86
  %v93 = vrsqrt.pop %v87
  %v94 = vrsqrt.pop %v88
  %v95 = vrsqrt.pop %v89
  %v96 = vmul.f32 %v48, %v90
  %v97 = vmul.f32 %v49, %v91
  %v98 = vmul.f32 %v50, %v92
  %v99 = vmul.f32 %v51, %v93
  %v100 = vmul.f32 %v52, %v94
  %v101 = vmul.f32 %v53, %v95
  %v103 = vlaneseq
  %v104 = vshrl.u32 %v103, 7
  %v105 = vsub.s32 0, %v104
  %v106 = vrot.slane %v20, %v105
  %v108 = vmul.f32 %v96, %v106
  %v109 = vmul.f32 %v97, %v106
  %v110 = vmul.f32 %v98, %v106
  %v111 = vmul.f32 %v99, %v106
  %v112 = vmul.f32 %v100, %v106
  %v113 = vmul.f32 %v101, %v106
  %v115 = vlaneseq
  %v116 = vshrl.u32 %v115, 7
  %v117 = vsub.s32 0, %v116
  %v118 = vrot.slane %v21, %v117
  %v120 = vadd.f32 %v108, %v118
  %v121 = vadd.f32 %v109, %v118
  %v122 = vadd.f32 %v110, %v118
  %v123 = vadd.f32 %v111, %v118
  %v124 = vadd.f32 %v112, %v118
  %v125 = vadd.f32 %v113, %v118
  %126 = vst.msk [vmem:[%s3] sm:$0xff] %vm22, %v120
  %127 = vst.msk [vmem:[%s3 + $0x8] sm:$0xff] %vm22, %v121
  %128 = vst.msk [vmem:[%s3 + $0x10] sm:$0xff] %vm22, %v122
  %129 = vst.msk [vmem:[%s3 + $0x18] sm:$0xff] %vm22, %v123
  %130 = vst.msk [vmem:[%s3 + $0x20] sm:$0xff] %vm22, %v124
  %131 = vst.msk [vmem:[%s3 + $0x28] sm:$0xff] %vm22, %v125
  // Predicated region
  $region14: #{clip_penultimate_forward.8} parent=0 // pred_check
    _
  $region15: #{clip_penultimate_forward.8} parent=0 // pred_check_branch
    %133 = sbr.rel (0) target = $region17
  $region16: #{clip_penultimate_forward.8} parent=0 // pred_region
    _
  $region17: #{clip_penultimate_forward.8} parent=0 // pred_fallthru
    _
  // Predicated region
  $region18: #{clip_penultimate_forward.8} parent=0 // pred_check
    _
  $region19: #{clip_penultimate_forward.8} parent=0 // pred_check_branch
    %135 = sbr.rel (0) target = $region21
  $region20: #{clip_penultimate_forward.8} parent=0 // pred_region
    _
  $region21: #{clip_penultimate_forward.8} parent=0 // pred_fallthru
    _

// kernel: clip_penultimate_forward.10
$region0: #{clip_penultimate_forward.10}
  #allocation0 [shape = 'u32[]', space=smem, size = 0x4, offset = 0x4, fixed_abs, tag = 'smem constant byte address 0x4 - core index']
  #allocation1 [shape = 'u32[144,128]{1,0:T(1,128)}', space=vmem, size = 0x12000, scoped, tag = 'internal scratch']
  %s0 = inlined_call_operand.vmem [shape: f32[48,32], index: 0, kind: input, shape index: {}]
  %s1 = inlined_call_operand.vmem [shape: f32[1,32], index: 1, kind: input, shape index: {}]
  %s2 = inlined_call_operand.vmem [shape: f32[1,32], index: 2, kind: input, shape index: {}]
  %s3 = inlined_call_operand.vmem [shape: bf16[32,128], index: 3, kind: input, shape index: {}]
  %s4 = inlined_call_operand.vmem [shape: f32[1,128], index: 4, kind: input, shape index: {}]
  %s5 = inlined_call_operand.vmem [shape: bf16[128,32], index: 5, kind: input, shape index: {}]
  %s6 = inlined_call_operand.vmem [shape: f32[1,32], index: 6, kind: input, shape index: {}]
  %s7 = inlined_call_operand.vmem [shape: f32[48,32], index: 7, kind: output, shape index: {}]
  %s8 = sld [smem:[#allocation0]]
  $region38: #{clip_penultimate_forward.10} parent=0
    _
  %s10 = ssub.s32 1, %s8
  %s11 = scalar_select 0, %s10, %s8
  // Predicated region
  $region2: #{clip_penultimate_forward.10} parent=0 // pred_check
    _
  $region3: #{clip_penultimate_forward.10} parent=0 // pred_check_branch
    %13 = sbr.rel (0) target = $region5
  $region4: #{clip_penultimate_forward.10} parent=0 // pred_region
    _
  $region5: #{clip_penultimate_forward.10} parent=0 // pred_fallthru
    _
  // Predicated region
  $region6: #{clip_penultimate_forward.10} parent=0 // pred_check
    _
  $region7: #{clip_penultimate_forward.10} parent=0 // pred_check_branch
    %15 = sbr.rel (0) target = $region9
  $region8: #{clip_penultimate_forward.10} parent=0 // pred_region
    _
  $region9: #{clip_penultimate_forward.10} parent=0 // pred_fallthru
    _
  // Predicated region
  $region10: #{clip_penultimate_forward.10} parent=0 // pred_check
    _
  $region11: #{clip_penultimate_forward.10} parent=0 // pred_check_branch
    %17 = sbr.rel (0) target = $region13
  $region12: #{clip_penultimate_forward.10} parent=0 // pred_region
    _
  $region13: #{clip_penultimate_forward.10} parent=0 // pred_fallthru
    _
  // Predicated region
  $region14: #{clip_penultimate_forward.10} parent=0 // pred_check
    _
  $region15: #{clip_penultimate_forward.10} parent=0 // pred_check_branch
    %19 = sbr.rel (0) target = $region17
  $region16: #{clip_penultimate_forward.10} parent=0 // pred_region
    _
  $region17: #{clip_penultimate_forward.10} parent=0 // pred_fallthru
    _
  // Predicated region
  $region18: #{clip_penultimate_forward.10} parent=0 // pred_check
    _
  $region19: #{clip_penultimate_forward.10} parent=0 // pred_check_branch
    %21 = sbr.rel (0) target = $region21
  $region20: #{clip_penultimate_forward.10} parent=0 // pred_region
    _
  $region21: #{clip_penultimate_forward.10} parent=0 // pred_fallthru
    _
  // Predicated region
  $region22: #{clip_penultimate_forward.10} parent=0 // pred_check
    _
  $region23: #{clip_penultimate_forward.10} parent=0 // pred_check_branch
    %23 = sbr.rel (0) target = $region25
  $region24: #{clip_penultimate_forward.10} parent=0 // pred_region
    _
  $region25: #{clip_penultimate_forward.10} parent=0 // pred_fallthru
    _
  // Predicated region
  $region26: #{clip_penultimate_forward.10} parent=0 // pred_check
    _
  $region27: #{clip_penultimate_forward.10} parent=0 // pred_check_branch
    %25 = sbr.rel (0) target = $region29
  $region28: #{clip_penultimate_forward.10} parent=0 // pred_region
    _
  $region29: #{clip_penultimate_forward.10} parent=0 // pred_fallthru
    _
  %v27 = vld [vmem:[%s0] sm:$0xff]
  %v28 = vld [vmem:[%s0 + $0x8] sm:$0xff]
  %v29 = vld [vmem:[%s0 + $0x10] sm:$0xff]
  %v30 = vld [vmem:[%s0 + $0x18] sm:$0xff]
  %v31 = vld [vmem:[%s0 + $0x20] sm:$0xff]
  %v32 = vld [vmem:[%s0 + $0x28] sm:$0xff]
  %v33 = vld [vmem:[%s1] sm:$0x1]
  %v34 = vld [vmem:[%s2] sm:$0x1]
  %vm35 = vcmask 261120
  %v36 = vsel %vm35, %v27, 0.0
  %37 = vadd.xlane.f32.xlu0 %v36
  %v38 = vpop.xlane.xlu0 %37
  %v39 = vsel %vm35, %v28, 0.0
  %40 = vadd.xlane.f32.xlu0 %v39
  %v41 = vpop.xlane.xlu0 %40
  %v42 = vsel %vm35, %v29, 0.0
  %43 = vadd.xlane.f32.xlu0 %v42
  %v44 = vpop.xlane.xlu0 %43
  %v45 = vsel %vm35, %v30, 0.0
  %46 = vadd.xlane.f32.xlu0 %v45
  %v47 = vpop.xlane.xlu0 %46
  %v48 = vsel %vm35, %v31, 0.0
  %49 = vadd.xlane.f32.xlu0 %v48
  %v50 = vpop.xlane.xlu0 %49
  %v51 = vsel %vm35, %v32, 0.0
  %52 = vadd.xlane.f32.xlu0 %v51
  %v53 = vpop.xlane.xlu0 %52
  %v54 = vrcp.pop 32.0
  %v55 = vmul.f32 %v38, %v54
  %v56 = vmul.f32 %v41, %v54
  %v57 = vmul.f32 %v44, %v54
  %v58 = vmul.f32 %v47, %v54
  %v59 = vmul.f32 %v50, %v54
  %v60 = vmul.f32 %v53, %v54
  %v61 = vsub.f32 %v27, %v55
  %v62 = vsub.f32 %v28, %v56
  %v63 = vsub.f32 %v29, %v57
  %v64 = vsub.f32 %v30, %v58
  %v65 = vsub.f32 %v31, %v59
  %v66 = vsub.f32 %v32, %v60
  %v67 = vmul.f32 %v61, %v61
  %v68 = vmul.f32 %v62, %v62
  %v69 = vmul.f32 %v63, %v63
  %v70 = vmul.f32 %v64, %v64
  %v71 = vmul.f32 %v65, %v65
  %v72 = vmul.f32 %v66, %v66
  %v73 = vsel %vm35, %v67, 0.0
  %74 = vadd.xlane.f32.xlu0 %v73
  %v75 = vpop.xlane.xlu0 %74
  %v76 = vsel %vm35, %v68, 0.0
  %77 = vadd.xlane.f32.xlu0 %v76
  %v78 = vpop.xlane.xlu0 %77
  %v79 = vsel %vm35, %v69, 0.0
  %80 = vadd.xlane.f32.xlu0 %v79
  %v81 = vpop.xlane.xlu0 %80
  %v82 = vsel %vm35, %v70, 0.0
  %83 = vadd.xlane.f32.xlu0 %v82
  %v84 = vpop.xlane.xlu0 %83
  %v85 = vsel %vm35, %v71, 0.0
  %86 = vadd.xlane.f32.xlu0 %v85
  %v87 = vpop.xlane.xlu0 %86
  %v88 = vsel %vm35, %v72, 0.0
  %89 = vadd.xlane.f32.xlu0 %v88
  %v90 = vpop.xlane.xlu0 %89
  %v91 = vmul.f32 %v75, %v54
  %v92 = vmul.f32 %v78, %v54
  %v93 = vmul.f32 %v81, %v54
  %v94 = vmul.f32 %v84, %v54
  %v95 = vmul.f32 %v87, %v54
  %v96 = vmul.f32 %v90, %v54
  %v97 = vadd.f32 %v91, 1e-05
  %v98 = vadd.f32 %v92, 1e-05
  %v99 = vadd.f32 %v93, 1e-05
  %v100 = vadd.f32 %v94, 1e-05
  %v101 = vadd.f32 %v95, 1e-05
  %v102 = vadd.f32 %v96, 1e-05
  %v103 = vrsqrt.pop %v97
  %v104 = vrsqrt.pop %v98
  %v105 = vrsqrt.pop %v99
  %v106 = vrsqrt.pop %v100
  %v107 = vrsqrt.pop %v101
  %v108 = vrsqrt.pop %v102
  %v109 = vmul.f32 %v61, %v103
  %v110 = vmul.f32 %v62, %v104
  %v111 = vmul.f32 %v63, %v105
  %v112 = vmul.f32 %v64, %v106
  %v113 = vmul.f32 %v65, %v107
  %v114 = vmul.f32 %v66, %v108
  %v116 = vlaneseq
  %v117 = vshrl.u32 %v116, 7
  %v118 = vsub.s32 0, %v117
  %v119 = vrot.slane %v33, %v118
  %v121 = vmul.f32 %v109, %v119
  %v122 = vmul.f32 %v110, %v119
  %v123 = vmul.f32 %v111, %v119
  %v124 = vmul.f32 %v112, %v119
  %v125 = vmul.f32 %v113, %v119
  %v126 = vmul.f32 %v114, %v119
  %v128 = vlaneseq
  %v129 = vshrl.u32 %v128, 7
  %v130 = vsub.s32 0, %v129
  %v131 = vrot.slane %v34, %v130
  %v133 = vadd.f32 %v121, %v131
  %v134 = vadd.f32 %v122, %v131
  %v135 = vadd.f32 %v123, %v131
  %v136 = vadd.f32 %v124, %v131
  %v137 = vadd.f32 %v125, %v131
  %v138 = vadd.f32 %v126, %v131
  %v139 = vpack.c.bf16 %v134, %v133
  %v140 = vpack.c.bf16 %v136, %v135
  %v141 = vpack.c.bf16 %v138, %v137
  %v142 = vld [vmem:[%s3] sm:$0xf]
  %v143 = vld [vmem:[%s3 + $0x4] sm:$0xf]
  %v144 = vld [vmem:[%s3 + $0x8] sm:$0xf]
  %v145 = vld [vmem:[%s3 + $0xc] sm:$0xf]
  %v146 = vld [vmem:[%s4] sm:$0x1]
  %v148 = vlaneseq
  %v149 = vshrl.u32 %v148, 7
  %v150 = vsub.s32 0, %v149
  %v151 = vrot.slane %v146, %v150
  %v157 = vunpack.c.l.b16 %v142
  %v158 = vunpack.c.l.b16 %v143
  %v159 = vunpack.c.l.b16 %v144
  %v160 = vunpack.c.l.b16 %v145
  %v161 = vpack.c.b16 %v158, %v157
  %v162 = vpack.c.b16 %v160, %v159
  %v166 = vsel %vm35, %v139, 0
  %v169 = vsel %vm35, %v140, 0
  %v172 = vsel %vm35, %v141, 0
  %174 = vmatprep.subr.bf16.mxu0 0
  %175 = vmatpush1.bf16.msra.mxu0 %v161
  %176 = vmatprep.subr.bf16.mxu0 0
  %177 = vmatpush1.bf16.msra.mxu0 %v162
  %178 = vmatprep.subr.bf16.mxu0 0
  %179 = vmatpush1.bf16.msra.mxu0 0
  %180 = vmatprep.subr.bf16.mxu0 0
  %181 = vmatpush1.bf16.msra.mxu0 0
  %182 = vmatprep.subr.bf16.mxu0 0
  %183 = vmatpush1.bf16.msra.mxu0 0
  %184 = vmatprep.subr.bf16.mxu0 0
  %185 = vmatpush1.bf16.msra.mxu0 0
  %186 = vmatprep.subr.bf16.mxu0 0
  %187 = vmatpush1.bf16.msra.mxu0 0
  %188 = vmatprep.subr.bf16.mxu0 0
  %189 = vmatpush1.bf16.msra.mxu0 0
  %190 = vmatprep.subr.bf16.mxu0 0
  %191 = vmatpush1.bf16.msra.mxu0 0
  %192 = vmatprep.subr.bf16.mxu0 0
  %193 = vmatpush1.bf16.msra.mxu0 0
  %194 = vmatprep.subr.bf16.mxu0 0
  %195 = vmatpush1.bf16.msra.mxu0 0
  %196 = vmatprep.subr.bf16.mxu0 0
  %197 = vmatpush1.bf16.msra.mxu0 0
  %198 = vmatprep.subr.bf16.mxu0 0
  %199 = vmatpush1.bf16.msra.mxu0 0
  %200 = vmatprep.subr.bf16.mxu0 0
  %201 = vmatpush1.bf16.msra.mxu0 0
  %202 = vmatprep.subr.bf16.mxu0 0
  %203 = vmatpush1.bf16.msra.mxu0 0
  %204 = vmatprep.subr.bf16.mxu0 0
  %205 = vmatpush1.bf16.msra.mxu0 0
  %206 = vmatprep.mubr.bf16.mxu0 0
  %207 = vmatmul.mubr.bf16.gmra.mrb[0].mxu0 %v166
  %v208 = vpop.f32.mrb[0].mxu0
  %v209 = vadd.f32 %v151, %v208
  %v210 = vpop.f32.mrb[0].mxu0
  %v211 = vpop.f32.mrb[0].mxu0
  %v212 = vadd.f32 %v151, %v211
  %v213 = vpop.f32.mrb[0].mxu0
  %214 = vmatprep.mubr.bf16.mxu0 0
  %215 = vmatmul.mubr.bf16.gmra.mrb[0].mxu0 %v169
  %v216 = vpop.f32.mrb[0].mxu0
  %v217 = vadd.f32 %v151, %v216
  %v218 = vpop.f32.mrb[0].mxu0
  %v219 = vpop.f32.mrb[0].mxu0
  %v220 = vadd.f32 %v151, %v219
  %v221 = vpop.f32.mrb[0].mxu0
  %222 = vmatprep.mubr.bf16.mxu0 0
  %223 = vmatmul.mubr.bf16.gmra.mrb[0].mxu0 %v172
  %v224 = vpop.f32.mrb[0].mxu0
  %v225 = vadd.f32 %v151, %v224
  %v226 = vpop.f32.mrb[0].mxu0
  %v227 = vpop.f32.mrb[0].mxu0
  %v228 = vadd.f32 %v151, %v227
  %v229 = vpop.f32.mrb[0].mxu0
  %230 = vdwg.mxu0
  %v231 = vmul.f32 %v209, 1.702
  %v232 = vmul.f32 %v212, 1.702
  %v233 = vmul.f32 %v217, 1.702
  %v234 = vmul.f32 %v220, 1.702
  %v235 = vmul.f32 %v225, 1.702
  %v236 = vmul.f32 %v228, 1.702
  %v237 = vxor.u32 %v231, 2147483648
  %v238 = vxor.u32 %v232, 2147483648
  %v239 = vxor.u32 %v233, 2147483648
  %v240 = vxor.u32 %v234, 2147483648
  %v241 = vxor.u32 %v235, 2147483648
  %v242 = vxor.u32 %v236, 2147483648
  %v243 = vmul.f32 %v237, 1.442695
  %v244 = vpow.pop %v243
  %v245 = vmul.f32 %v238, 1.442695
  %v246 = vpow.pop %v245
  %v247 = vmul.f32 %v239, 1.442695
  %v248 = vpow.pop %v247
  %v249 = vmul.f32 %v240, 1.442695
  %v250 = vpow.pop %v249
  %v251 = vmul.f32 %v241, 1.442695
  %v252 = vpow.pop %v251
  %v253 = vmul.f32 %v242, 1.442695
  %v254 = vpow.pop %v253
  %v255 = vadd.f32 %v244, 1.0
  %v256 = vadd.f32 %v246, 1.0
  %v257 = vadd.f32 %v248, 1.0
  %v258 = vadd.f32 %v250, 1.0
  %v259 = vadd.f32 %v252, 1.0
  %v260 = vadd.f32 %v254, 1.0
  %v261 = vrcp.pop %v255
  %v262 = vmul.f32 1.0, %v261
  %v263 = vrcp.pop %v256
  %v264 = vmul.f32 1.0, %v263
  %v265 = vrcp.pop %v257
  %v266 = vmul.f32 1.0, %v265
  %v267 = vrcp.pop %v258
  %v268 = vmul.f32 1.0, %v267
  %v269 = vrcp.pop %v259
  %v270 = vmul.f32 1.0, %v269
  %v271 = vrcp.pop %v260
  %v272 = vmul.f32 1.0, %v271
  %v273 = vmul.f32 %v209, %v262
  %v274 = vmul.f32 %v212, %v264
  %v275 = vmul.f32 %v217, %v266
  %v276 = vmul.f32 %v220, %v268
  %v277 = vmul.f32 %v225, %v270
  %v278 = vmul.f32 %v228, %v272
  %v279 = vpack.c.bf16 %v274, %v273
  %v280 = vpack.c.bf16 %v276, %v275
  %v281 = vpack.c.bf16 %v278, %v277
  %v282 = vld [vmem:[%s5] sm:$0xf]
  %v283 = vld [vmem:[%s5 + $0x4] sm:$0xf]
  %v284 = vld [vmem:[%s5 + $0x8] sm:$0xf]
  %v285 = vld [vmem:[%s5 + $0xc] sm:$0xf]
  %v286 = vld [vmem:[%s5 + $0x10] sm:$0xf]
  %v287 = vld [vmem:[%s5 + $0x14] sm:$0xf]
  %v288 = vld [vmem:[%s5 + $0x18] sm:$0xf]
  %v289 = vld [vmem:[%s5 + $0x1c] sm:$0xf]
  %v290 = vld [vmem:[%s5 + $0x20] sm:$0xf]
  %v291 = vld [vmem:[%s5 + $0x24] sm:$0xf]
  %v292 = vld [vmem:[%s5 + $0x28] sm:$0xf]
  %v293 = vld [vmem:[%s5 + $0x2c] sm:$0xf]
  %v294 = vld [vmem:[%s5 + $0x30] sm:$0xf]
  %v295 = vld [vmem:[%s5 + $0x34] sm:$0xf]
  %v296 = vld [vmem:[%s5 + $0x38] sm:$0xf]
  %v297 = vld [vmem:[%s5 + $0x3c] sm:$0xf]
  %v298 = vld [vmem:[%s6] sm:$0x1]
  %v300 = vlaneseq
  %v301 = vshrl.u32 %v300, 7
  %v302 = vsub.s32 0, %v301
  %v303 = vrot.slane %v298, %v302
  %v321 = vunpack.c.l.b16 %v282
  %v322 = vunpack.c.l.b16 %v283
  %v323 = vunpack.c.l.b16 %v284
  %v324 = vunpack.c.l.b16 %v285
  %v325 = vunpack.c.l.b16 %v286
  %v326 = vunpack.c.l.b16 %v287
  %v327 = vunpack.c.l.b16 %v288
  %v328 = vunpack.c.l.b16 %v289
  %v329 = vunpack.c.l.b16 %v290
  %v330 = vunpack.c.l.b16 %v291
  %v331 = vunpack.c.l.b16 %v292
  %v332 = vunpack.c.l.b16 %v293
  %v333 = vunpack.c.l.b16 %v294
  %v334 = vunpack.c.l.b16 %v295
  %v335 = vunpack.c.l.b16 %v296
  %v336 = vunpack.c.l.b16 %v297
  %v337 = vpack.c.b16 %v322, %v321
  %v338 = vpack.c.b16 %v324, %v323
  %v339 = vpack.c.b16 %v326, %v325
  %v340 = vpack.c.b16 %v328, %v327
  %v341 = vpack.c.b16 %v330, %v329
  %v342 = vpack.c.b16 %v332, %v331
  %v343 = vpack.c.b16 %v334, %v333
  %v344 = vpack.c.b16 %v336, %v335
  %353 = vmatprep.subr.bf16.mxu0 0
  %354 = vmatpush1.bf16.msra.mxu0 %v337
  %355 = vmatprep.subr.bf16.mxu0 0
  %356 = vmatpush1.bf16.msra.mxu0 %v338
  %357 = vmatprep.subr.bf16.mxu0 0
  %358 = vmatpush1.bf16.msra.mxu0 %v339
  %359 = vmatprep.subr.bf16.mxu0 0
  %360 = vmatpush1.bf16.msra.mxu0 %v340
  %361 = vmatprep.subr.bf16.mxu0 0
  %362 = vmatpush1.bf16.msra.mxu0 %v341
  %363 = vmatprep.subr.bf16.mxu0 0
  %364 = vmatpush1.bf16.msra.mxu0 %v342
  %365 = vmatprep.subr.bf16.mxu0 0
  %366 = vmatpush1.bf16.msra.mxu0 %v343
  %367 = vmatprep.subr.bf16.mxu0 0
  %368 = vmatpush1.bf16.msra.mxu0 %v344
  %369 = vmatprep.subr.bf16.mxu0 0
  %370 = vmatpush1.bf16.msra.mxu0 0
  %371 = vmatprep.subr.bf16.mxu0 0
  %372 = vmatpush1.bf16.msra.mxu0 0
  %373 = vmatprep.subr.bf16.mxu0 0
  %374 = vmatpush1.bf16.msra.mxu0 0
  %375 = vmatprep.subr.bf16.mxu0 0
  %376 = vmatpush1.bf16.msra.mxu0 0
  %377 = vmatprep.subr.bf16.mxu0 0
  %378 = vmatpush1.bf16.msra.mxu0 0
  %379 = vmatprep.subr.bf16.mxu0 0
  %380 = vmatpush1.bf16.msra.mxu0 0
  %381 = vmatprep.subr.bf16.mxu0 0
  %382 = vmatpush1.bf16.msra.mxu0 0
  %383 = vmatprep.subr.bf16.mxu0 0
  %384 = vmatpush1.bf16.msra.mxu0 0
  %385 = vmatprep.mubr.bf16.mxu0 0
  %386 = vmatmul.mubr.bf16.gmra.mrb[0].mxu0 %v279
  %v387 = vpop.f32.mrb[0].mxu0
  %v388 = vadd.f32 %v303, %v387
  %v389 = vpop.f32.mrb[0].mxu0
  %v390 = vpop.f32.mrb[0].mxu0
  %v391 = vadd.f32 %v303, %v390
  %v392 = vpop.f32.mrb[0].mxu0
  %393 = vmatprep.mubr.bf16.mxu0 0
  %394 = vmatmul.mubr.bf16.gmra.mrb[0].mxu0 %v280
  %v395 = vpop.f32.mrb[0].mxu0
  %v396 = vadd.f32 %v303, %v395
  %v397 = vpop.f32.mrb[0].mxu0
  %v398 = vpop.f32.mrb[0].mxu0
  %v399 = vadd.f32 %v303, %v398
  %v400 = vpop.f32.mrb[0].mxu0
  %401 = vmatprep.mubr.bf16.mxu0 0
  %402 = vmatmul.mubr.bf16.gmra.mrb[0].mxu0 %v281
  %v403 = vpop.f32.mrb[0].mxu0
  %v404 = vadd.f32 %v303, %v403
  %v405 = vpop.f32.mrb[0].mxu0
  %v406 = vpop.f32.mrb[0].mxu0
  %v407 = vadd.f32 %v303, %v406
  %v408 = vpop.f32.mrb[0].mxu0
  %409 = vdwg.mxu0
  %v410 = vadd.f32 %v27, %v388
  %v411 = vadd.f32 %v28, %v391
  %v412 = vadd.f32 %v29, %v396
  %v413 = vadd.f32 %v30, %v399
  %v414 = vadd.f32 %v31, %v404
  %v415 = vadd.f32 %v32, %v407
  %416 = vst.msk [vmem:[%s7] sm:$0xff] %vm35, %v410
  %417 = vst.msk [vmem:[%s7 + $0x8] sm:$0xff] %vm35, %v411
  %418 = vst.msk [vmem:[%s7 + $0x10] sm:$0xff] %vm35, %v412
  %419 = vst.msk [vmem:[%s7 + $0x18] sm:$0xff] %vm35, %v413
  %420 = vst.msk [vmem:[%s7 + $0x20] sm:$0xff] %vm35, %v414
  %421 = vst.msk [vmem:[%s7 + $0x28] sm:$0xff] %vm35, %v415
  // Predicated region
  $region30: #{clip_penultimate_forward.10} parent=0 // pred_check
    _
  $region31: #{clip_penultimate_forward.10} parent=0 // pred_check_branch
    %423 = sbr.rel (0) target = $region33
  $region32: #{clip_penultimate_forward.10} parent=0 // pred_region
    _
  $region33: #{clip_penultimate_forward.10} parent=0 // pred_fallthru
    _
  // Predicated region
  $region34: #{clip_penultimate_forward.10} parent=0 // pred_check
    _
  $region35: #{clip_penultimate_forward.10} parent=0 // pred_check_branch
    %425 = sbr.rel (0) target = $region37
  $region36: #{clip_penultimate_forward.10} parent=0 // pred_region
    _
  $region37: #{clip_penultimate_forward.10} parent=0 // pred_fallthru
    _

// kernel: clip_penultimate_forward.9
$region0: #{clip_penultimate_forward.9}
  #allocation0 [shape = 'u32[]', space=smem, size = 0x4, offset = 0x4, fixed_abs, tag = 'smem constant byte address 0x4 - core index']
  #allocation1 [shape = 'u32[144,128]{1,0:T(1,128)}', space=vmem, size = 0x12000, scoped, tag = 'internal scratch']
  %s0 = inlined_call_operand.vmem [shape: f32[2,24,32], index: 0, kind: input, shape index: {}]
  %s1 = inlined_call_operand.vmem [shape: f32[1,32], index: 1, kind: input, shape index: {}]
  %s2 = inlined_call_operand.vmem [shape: f32[1,32], index: 2, kind: input, shape index: {}]
  %s3 = inlined_call_operand.vmem [shape: bf16[32,96], index: 3, kind: input, shape index: {}]
  %s4 = inlined_call_operand.vmem [shape: f32[1,96], index: 4, kind: input, shape index: {}]
  %s5 = inlined_call_operand.vmem [shape: bf16[32,32], index: 5, kind: input, shape index: {}]
  %s6 = inlined_call_operand.vmem [shape: f32[1,32], index: 6, kind: input, shape index: {}]
  %s7 = inlined_call_operand.vmem [shape: f32[2,24,32], index: 7, kind: output, shape index: {}]
  %s8 = sld [smem:[#allocation0]]
  $region61: #{clip_penultimate_forward.9} parent=0
    _
  %s10 = ssub.s32 1, %s8
  %s11 = scalar_select 0, %s10, %s8
  loop: start=0, step=1, limit=4
  $region2: #{clip_penultimate_forward.9} parent=0 // loop_pre_header
    _
  $region3: #{clip_penultimate_forward.9} parent=0 // loop_header
    %s13 = sphi 0, %s17
    %p14 = scmp.ge.s32.totalorder %s13, 4
    %s23 = sphi 0, %s25
    %s26 = sphi 0, %s23
    %s27 = sphi 0, %s26
    %s43 = sphi 0, %s27
    %s47 = sphi 0, %s47
    %s49 = sphi 0, %s47
    %s50 = sphi 0, %s49
    %s64 = sphi 0, %s50
    %s68 = sphi 0, %s68
    %s70 = sphi 0, %s68
    %s71 = sphi 0, %s70
    %s85 = sphi 0, %s71
    %s89 = sphi 0, %s89
    %s91 = sphi 0, %s89
    %s92 = sphi 0, %s91
    %s106 = sphi 0, %s92
    %s110 = sphi 0, %s110
    %s112 = sphi 0, %s110
    %s113 = sphi 0, %s112
    %s127 = sphi 0, %s113
    %s131 = sphi 0, %s131
    %s133 = sphi 0, %s131
    %s134 = sphi 0, %s133
    %s148 = sphi 0, %s134
    %s152 = sphi 0, %s152
    %s154 = sphi 0, %s152
    %s155 = sphi 0, %s154
    %s169 = sphi 0, %s155
    %s175 = sphi 0, %s177
    %s178 = sphi 0, %s175
    %s179 = sphi 0, %s178
    %s195 = sphi 0, %s179
  $region4: #{clip_penultimate_forward.9} parent=0 // loop_header_branch
    %16 = sbr.rel (%p14) target = $region8
  $region5: #{clip_penultimate_forward.9} parent=0 // loop_body
    %s18 = ssub.s32 %s13, 1
    %s19 = ssub.s32 %s13, 2
    %s20 = sadd.s32 %s13, 1
    %s21 = ssub.s32 %s13, %s20
    %p22 = scmp.eq.s32.totalorder %s21, 0
    %s24 = sadd.s32 %s23, 1
    %s25 = scalar_select %p22, %s23, %s24
    %p28 = pneg %p22
    %p29 = scmp.eq.s32.totalorder %s13, 1
    %p30 = por %p28, %p29
    %p31 = scmp.ne.s32.totalorder %s23, %s26
    %p32 = scmp.eq.s32.totalorder %s13, 0
    %p33 = por %p31, %p32
    %p34 = scmp.ne.s32.totalorder %s23, %s26
    %p35 = scmp.eq.s32.totalorder %s18, 1
    %p36 = por %p34, %p35
    %p37 = scmp.ne.s32.totalorder %s26, %s27
    %p38 = scmp.eq.s32.totalorder %s18, 0
    %p39 = por %p37, %p38
    %p40 = scmp.ne.s32.totalorder %s26, %s27
    %p41 = scmp.eq.s32.totalorder %s19, 1
    %p42 = por %p40, %p41
    %p44 = scmp.ne.s32.totalorder %s27, %s43
    %p45 = scmp.eq.s32.totalorder %s19, 0
    %p46 = por %p44, %p45
    %s48 = sadd.s32 %s47, 1
    %p51 = scmp.eq.s32.totalorder %s13, 1
    %p52 = scmp.ne.s32.totalorder %s47, %s49
    %p53 = scmp.eq.s32.totalorder %s13, 0
    %p54 = por %p52, %p53
    %p55 = scmp.ne.s32.totalorder %s47, %s49
    %p56 = scmp.eq.s32.totalorder %s18, 1
    %p57 = por %p55, %p56
    %p58 = scmp.ne.s32.totalorder %s49, %s50
    %p59 = scmp.eq.s32.totalorder %s18, 0
    %p60 = por %p58, %p59
    %p61 = scmp.ne.s32.totalorder %s49, %s50
    %p62 = scmp.eq.s32.totalorder %s19, 1
    %p63 = por %p61, %p62
    %p65 = scmp.ne.s32.totalorder %s50, %s64
    %p66 = scmp.eq.s32.totalorder %s19, 0
    %p67 = por %p65, %p66
    %s69 = sadd.s32 %s68, 1
    %p72 = scmp.eq.s32.totalorder %s13, 1
    %p73 = scmp.ne.s32.totalorder %s68, %s70
    %p74 = scmp.eq.s32.totalorder %s13, 0
    %p75 = por %p73, %p74
    %p76 = scmp.ne.s32.totalorder %s68, %s70
    %p77 = scmp.eq.s32.totalorder %s18, 1
    %p78 = por %p76, %p77
    %p79 = scmp.ne.s32.totalorder %s70, %s71
    %p80 = scmp.eq.s32.totalorder %s18, 0
    %p81 = por %p79, %p80
    %p82 = scmp.ne.s32.totalorder %s70, %s71
    %p83 = scmp.eq.s32.totalorder %s19, 1
    %p84 = por %p82, %p83
    %p86 = scmp.ne.s32.totalorder %s71, %s85
    %p87 = scmp.eq.s32.totalorder %s19, 0
    %p88 = por %p86, %p87
    %s90 = sadd.s32 %s89, 1
    %p93 = scmp.eq.s32.totalorder %s13, 1
    %p94 = scmp.ne.s32.totalorder %s89, %s91
    %p95 = scmp.eq.s32.totalorder %s13, 0
    %p96 = por %p94, %p95
    %p97 = scmp.ne.s32.totalorder %s89, %s91
    %p98 = scmp.eq.s32.totalorder %s18, 1
    %p99 = por %p97, %p98
    %p100 = scmp.ne.s32.totalorder %s91, %s92
    %p101 = scmp.eq.s32.totalorder %s18, 0
    %p102 = por %p100, %p101
    %p103 = scmp.ne.s32.totalorder %s91, %s92
    %p104 = scmp.eq.s32.totalorder %s19, 1
    %p105 = por %p103, %p104
    %p107 = scmp.ne.s32.totalorder %s92, %s106
    %p108 = scmp.eq.s32.totalorder %s19, 0
    %p109 = por %p107, %p108
    %s111 = sadd.s32 %s110, 1
    %p114 = scmp.eq.s32.totalorder %s13, 1
    %p115 = scmp.ne.s32.totalorder %s110, %s112
    %p116 = scmp.eq.s32.totalorder %s13, 0
    %p117 = por %p115, %p116
    %p118 = scmp.ne.s32.totalorder %s110, %s112
    %p119 = scmp.eq.s32.totalorder %s18, 1
    %p120 = por %p118, %p119
    %p121 = scmp.ne.s32.totalorder %s112, %s113
    %p122 = scmp.eq.s32.totalorder %s18, 0
    %p123 = por %p121, %p122
    %p124 = scmp.ne.s32.totalorder %s112, %s113
    %p125 = scmp.eq.s32.totalorder %s19, 1
    %p126 = por %p124, %p125
    %p128 = scmp.ne.s32.totalorder %s113, %s127
    %p129 = scmp.eq.s32.totalorder %s19, 0
    %p130 = por %p128, %p129
    %s132 = sadd.s32 %s131, 1
    %p135 = scmp.eq.s32.totalorder %s13, 1
    %p136 = scmp.ne.s32.totalorder %s131, %s133
    %p137 = scmp.eq.s32.totalorder %s13, 0
    %p138 = por %p136, %p137
    %p139 = scmp.ne.s32.totalorder %s131, %s133
    %p140 = scmp.eq.s32.totalorder %s18, 1
    %p141 = por %p139, %p140
    %p142 = scmp.ne.s32.totalorder %s133, %s134
    %p143 = scmp.eq.s32.totalorder %s18, 0
    %p144 = por %p142, %p143
    %p145 = scmp.ne.s32.totalorder %s133, %s134
    %p146 = scmp.eq.s32.totalorder %s19, 1
    %p147 = por %p145, %p146
    %p149 = scmp.ne.s32.totalorder %s134, %s148
    %p150 = scmp.eq.s32.totalorder %s19, 0
    %p151 = por %p149, %p150
    %s153 = sadd.s32 %s152, 1
    %p156 = scmp.eq.s32.totalorder %s13, 1
    %p157 = scmp.ne.s32.totalorder %s152, %s154
    %p158 = scmp.eq.s32.totalorder %s13, 0
    %p159 = por %p157, %p158
    %p160 = scmp.ne.s32.totalorder %s152, %s154
    %p161 = scmp.eq.s32.totalorder %s18, 1
    %p162 = por %p160, %p161
    %p163 = scmp.ne.s32.totalorder %s154, %s155
    %p164 = scmp.eq.s32.totalorder %s18, 0
    %p165 = por %p163, %p164
    %p166 = scmp.ne.s32.totalorder %s154, %s155
    %p167 = scmp.eq.s32.totalorder %s19, 1
    %p168 = por %p166, %p167
    %p170 = scmp.ne.s32.totalorder %s155, %s169
    %p171 = scmp.eq.s32.totalorder %s19, 0
    %p172 = por %p170, %p171
    %s173 = ssub.s32 %s13, %s20
    %p174 = scmp.eq.s32.totalorder %s173, 0
    %s176 = sadd.s32 %s175, 1
    %s177 = scalar_select %p174, %s175, %s176
    %p180 = pneg %p174
    %p181 = scmp.eq.s32.totalorder %s13, 1
    %p182 = por %p180, %p181
    %p183 = scmp.ne.s32.totalorder %s175, %s178
    %p184 = scmp.eq.s32.totalorder %s13, 0
    %p185 = por %p183, %p184
    %p186 = scmp.ne.s32.totalorder %s175, %s178
    %p187 = scmp.eq.s32.totalorder %s18, 1
    %p188 = por %p186, %p187
    %p189 = scmp.ne.s32.totalorder %s178, %s179
    %p190 = scmp.eq.s32.totalorder %s18, 0
    %p191 = por %p189, %p190
    %p192 = scmp.ne.s32.totalorder %s178, %s179
    %p193 = scmp.eq.s32.totalorder %s19, 1
    %p194 = por %p192, %p193
    %p196 = scmp.ne.s32.totalorder %s179, %s195
    %p197 = scmp.eq.s32.totalorder %s19, 0
    %p198 = por %p196, %p197
    %p199 = scmp.le.s32.totalorder 1, %s13
    %p200 = scmp.lt.s32.totalorder %s13, 3
    %p201 = pnand %p199, %p200
    %p202 = pneg %p201
    // Predicated region
    $region9: #{clip_penultimate_forward.9} parent=5 // pred_check
      _
    $region10: #{clip_penultimate_forward.9} parent=5 // pred_check_branch
      %204 = sbr.rel (%p201) target = $region12
    $region11: #{clip_penultimate_forward.9} parent=5 // pred_region
      %s205 = ssub.s32 %s13, 1
      // Predicated region
      $region13: #{clip_penultimate_forward.9} parent=11 // pred_check
        %p206 = pneg %p60
      $region14: #{clip_penultimate_forward.9} parent=11 // pred_check_branch
        %208 = sbr.rel (%p206) target = $region16
      $region15: #{clip_penultimate_forward.9} parent=11 // pred_region
        _
      $region16: #{clip_penultimate_forward.9} parent=11 // pred_fallthru
        _
      // Predicated region
      $region17: #{clip_penultimate_forward.9} parent=11 // pred_check
        %p209 = pneg %p81
      $region18: #{clip_penultimate_forward.9} parent=11 // pred_check_branch
        %211 = sbr.rel (%p209) target = $region20
      $region19: #{clip_penultimate_forward.9} parent=11 // pred_region
        _
      $region20: #{clip_penultimate_forward.9} parent=11 // pred_fallthru
        _
      // Predicated region
      $region21: #{clip_penultimate_forward.9} parent=11 // pred_check
        %p212 = pneg %p102
      $region22: #{clip_penultimate_forward.9} parent=11 // pred_check_branch
        %214 = sbr.rel (%p212) target = $region24
      $region23: #{clip_penultimate_forward.9} parent=11 // pred_region
        _
      $region24: #{clip_penultimate_forward.9} parent=11 // pred_fallthru
        _
      // Predicated region
      $region25: #{clip_penultimate_forward.9} parent=11 // pred_check
        %p215 = pneg %p123
      $region26: #{clip_penultimate_forward.9} parent=11 // pred_check_branch
        %217 = sbr.rel (%p215) target = $region28
      $region27: #{clip_penultimate_forward.9} parent=11 // pred_region
        _
      $region28: #{clip_penultimate_forward.9} parent=11 // pred_fallthru
        _
      // Predicated region
      $region29: #{clip_penultimate_forward.9} parent=11 // pred_check
        %p218 = pneg %p144
      $region30: #{clip_penultimate_forward.9} parent=11 // pred_check_branch
        %220 = sbr.rel (%p218) target = $region32
      $region31: #{clip_penultimate_forward.9} parent=11 // pred_region
        _
      $region32: #{clip_penultimate_forward.9} parent=11 // pred_fallthru
        _
      // Predicated region
      $region33: #{clip_penultimate_forward.9} parent=11 // pred_check
        %p221 = pneg %p165
      $region34: #{clip_penultimate_forward.9} parent=11 // pred_check_branch
        %223 = sbr.rel (%p221) target = $region36
      $region35: #{clip_penultimate_forward.9} parent=11 // pred_region
        _
      $region36: #{clip_penultimate_forward.9} parent=11 // pred_fallthru
        _
    $region12: #{clip_penultimate_forward.9} parent=5 // pred_fallthru
      _
    %p224 = scmp.lt.s32.totalorder %s13, 2
    // Predicated region
    $region37: #{clip_penultimate_forward.9} parent=5 // pred_check
      %p225 = pneg %p224
    $region38: #{clip_penultimate_forward.9} parent=5 // pred_check_branch
      %227 = sbr.rel (%p225) target = $region40
    $region39: #{clip_penultimate_forward.9} parent=5 // pred_region
      // Predicated region
      $region41: #{clip_penultimate_forward.9} parent=39 // pred_check
        %p228 = pneg %p33
      $region42: #{clip_penultimate_forward.9} parent=39 // pred_check_branch
        %230 = sbr.rel (%p228) target = $region44
      $region43: #{clip_penultimate_forward.9} parent=39 // pred_region
        %p231 = scmp.lt.s32.totalorder %s13, 1
        %s232 = scalar_select %p231, %s13, 1
        %s233 = smul.addr %s232, 3
        %s234 = smul.addr %s233, 8
        %s235 = scalar_lea.vmem %s0, %s234
      $region44: #{clip_penultimate_forward.9} parent=39 // pred_fallthru
        _
    $region40: #{clip_penultimate_forward.9} parent=5 // pred_fallthru
      _
    %p236 = scmp.le.s32.totalorder 1, %s13
    %p237 = scmp.lt.s32.totalorder %s13, 3
    %p238 = pnand %p236, %p237
    %p239 = pneg %p238
    // Predicated region
    $region45: #{clip_penultimate_forward.9} parent=5 // pred_check
      _
    $region46: #{clip_penultimate_forward.9} parent=5 // pred_check_branch
      %241 = sbr.rel (%p238) target = $region48
    $region47: #{clip_penultimate_forward.9} parent=5 // pred_region
      %s242 = ssub.s32 %s13, 1
      %p243 = scmp.lt.s32.totalorder %s18, 1
      %s244 = scalar_select %p243, %s18, 1
      %s245 = smul.addr %s244, 3
      %s246 = smul.addr %s245, 8
      %s247 = scalar_lea.vmem %s0, %s246
      %p248 = pneg %p39
      %p249 = pneg %p36
      %p250 = pneg %p60
      %p251 = pneg %p57
      %p252 = pneg %p81
      %p253 = pneg %p78
      %p254 = pneg %p102
      %p255 = pneg %p99
      %p256 = pneg %p123
      %p257 = pneg %p120
      %p258 = pneg %p144
      %p259 = pneg %p141
      %p260 = pneg %p165
      %p261 = pneg %p162
      %p262 = pneg %p191
      %p263 = pneg %p188
      %p264 = scmp.lt.s32.totalorder %s18, 1
      %s265 = scalar_select %p264, %s18, 1
      %s266 = smul.addr %s265, 3
      %s267 = smul.addr %s266, 8
      %s268 = scalar_lea.vmem %s7, %s267
      %p269 = scmp.lt.s32.totalorder %s18, 1
      %s270 = scalar_select %p269, %s18, 1
      %s271 = smul.addr %s270, 3
      %s272 = smul.addr %s271, 8
      %s273 = scalar_lea.vmem %s0, %s272
      %p274 = scmp.lt.s32.totalorder %s18, 1
      %s275 = scalar_select %p274, %s18, 1
      %s276 = smul.addr %s275, 3
      %s277 = smul.addr %s276, 8
      %s278 = scalar_lea.vmem %s7, %s277
      %v280 = vld [vmem:[%s273] sm:$0xff]
      %v281 = vld [vmem:[%s273 + $0x8] sm:$0xff]
      %v282 = vld [vmem:[%s273 + $0x10] sm:$0xff]
      %v283 = vld [vmem:[%s1] sm:$0x1]
      %v284 = vld [vmem:[%s2] sm:$0x1]
      %vm285 = vcmask 261120
      %v286 = vsel %vm285, %v280, 0.0
      %287 = vadd.xlane.f32.xlu0 %v286
      %v288 = vpop.xlane.xlu0 %287
      %v289 = vsel %vm285, %v281, 0.0
      %290 = vadd.xlane.f32.xlu0 %v289
      %v291 = vpop.xlane.xlu0 %290
      %v292 = vsel %vm285, %v282, 0.0
      %293 = vadd.xlane.f32.xlu0 %v292
      %v294 = vpop.xlane.xlu0 %293
      %v295 = vrcp.pop 32.0
      %v296 = vmul.f32 %v288, %v295
      %v297 = vmul.f32 %v291, %v295
      %v298 = vmul.f32 %v294, %v295
      %v299 = vsub.f32 %v280, %v296
      %v300 = vsub.f32 %v281, %v297
      %v301 = vsub.f32 %v282, %v298
      %v302 = vmul.f32 %v299, %v299
      %v303 = vmul.f32 %v300, %v300
      %v304 = vmul.f32 %v301, %v301
      %v305 = vsel %vm285, %v302, 0.0
      %306 = vadd.xlane.f32.xlu0 %v305
      %v307 = vpop.xlane.xlu0 %306
      %v308 = vsel %vm285, %v303, 0.0
      %309 = vadd.xlane.f32.xlu0 %v308
      %v310 = vpop.xlane.xlu0 %309
      %v311 = vsel %vm285, %v304, 0.0
      %312 = vadd.xlane.f32.xlu0 %v311
      %v313 = vpop.xlane.xlu0 %312
      %v314 = vmul.f32 %v307, %v295
      %v315 = vmul.f32 %v310, %v295
      %v316 = vmul.f32 %v313, %v295
      %v317 = vadd.f32 %v314, 1e-05
      %v318 = vadd.f32 %v315, 1e-05
      %v319 = vadd.f32 %v316, 1e-05
      %v320 = vrsqrt.pop %v317
      %v321 = vrsqrt.pop %v318
      %v322 = vrsqrt.pop %v319
      %v323 = vmul.f32 %v299, %v320
      %v324 = vmul.f32 %v300, %v321
      %v325 = vmul.f32 %v301, %v322
      %v327 = vlaneseq
      %v328 = vshrl.u32 %v327, 7
      %v329 = vsub.s32 0, %v328
      %v330 = vrot.slane %v283, %v329
      %v332 = vmul.f32 %v323, %v330
      %v333 = vmul.f32 %v324, %v330
      %v334 = vmul.f32 %v325, %v330
      %v336 = vlaneseq
      %v337 = vshrl.u32 %v336, 7
      %v338 = vsub.s32 0, %v337
      %v339 = vrot.slane %v284, %v338
      %v341 = vadd.f32 %v332, %v339
      %v342 = vadd.f32 %v333, %v339
      %v343 = vadd.f32 %v334, %v339
      %v344 = vpack.c.bf16 %v342, %v341
      %v345 = vpack.c.bf16 %v343, %v343
      %v346 = vld [vmem:[%s3] sm:$0xf]
      %v347 = vld [vmem:[%s3 + $0x4] sm:$0xf]
      %v348 = vld [vmem:[%s3 + $0x8] sm:$0xf]
      %v349 = vld [vmem:[%s3 + $0xc] sm:$0xf]
      %v350 = vld [vmem:[%s4] sm:$0x1]
      %v352 = vlaneseq
      %v353 = vshrl.u32 %v352, 7
      %v354 = vsub.s32 0, %v353
      %v355 = vrot.slane %v350, %v354
      %v361 = vunpack.c.l.b16 %v346
      %v362 = vunpack.c.l.b16 %v347
      %v363 = vunpack.c.l.b16 %v348
      %v364 = vunpack.c.l.b16 %v349
      %v365 = vpack.c.b16 %v362, %v361
      %v366 = vpack.c.b16 %v364, %v363
      %v370 = vsel %vm285, %v344, 0
      %v373 = vsel %vm285, %v345, 0
      %375 = vmatprep.subr.bf16.mxu0 0
      %376 = vmatpush1.bf16.msra.mxu0 %v365
      %377 = vmatprep.subr.bf16.mxu0 0
      %378 = vmatpush1.bf16.msra.mxu0 %v366
      %379 = vmatprep.subr.bf16.mxu0 0
      %380 = vmatpush1.bf16.msra.mxu0 0
      %381 = vmatprep.subr.bf16.mxu0 0
      %382 = vmatpush1.bf16.msra.mxu0 0
      %383 = vmatprep.subr.bf16.mxu0 0
      %384 = vmatpush1.bf16.msra.mxu0 0
      %385 = vmatprep.subr.bf16.mxu0 0
      %386 = vmatpush1.bf16.msra.mxu0 0
      %387 = vmatprep.subr.bf16.mxu0 0
      %388 = vmatpush1.bf16.msra.mxu0 0
      %389 = vmatprep.subr.bf16.mxu0 0
      %390 = vmatpush1.bf16.msra.mxu0 0
      %391 = vmatprep.subr.bf16.mxu0 0
      %392 = vmatpush1.bf16.msra.mxu0 0
      %393 = vmatprep.subr.bf16.mxu0 0
      %394 = vmatpush1.bf16.msra.mxu0 0
      %395 = vmatprep.subr.bf16.mxu0 0
      %396 = vmatpush1.bf16.msra.mxu0 0
      %397 = vmatprep.subr.bf16.mxu0 0
      %398 = vmatpush1.bf16.msra.mxu0 0
      %399 = vmatprep.subr.bf16.mxu0 0
      %400 = vmatpush1.bf16.msra.mxu0 0
      %401 = vmatprep.subr.bf16.mxu0 0
      %402 = vmatpush1.bf16.msra.mxu0 0
      %403 = vmatprep.subr.bf16.mxu0 0
      %404 = vmatpush1.bf16.msra.mxu0 0
      %405 = vmatprep.subr.bf16.mxu0 0
      %406 = vmatpush1.bf16.msra.mxu0 0
      %407 = vmatprep.mubr.bf16.mxu0 0
      %408 = vmatmul.mubr.bf16.gmra.mrb[0].mxu0 %v370
      %v409 = vpop.f32.mrb[0].mxu0
      %v410 = vadd.f32 %v355, %v409
      %v411 = vpop.f32.mrb[0].mxu0
      %v412 = vpop.f32.mrb[0].mxu0
      %v413 = vadd.f32 %v355, %v412
      %v414 = vpop.f32.mrb[0].mxu0
      %415 = vmatprep.mubr.bf16.mxu0 0
      %416 = vmatmul.mubr.bf16.gmra.mrb[0].mxu0 %v373
      %v417 = vpop.f32.mrb[0].mxu0
      %v418 = vadd.f32 %v355, %v417
      %v419 = vpop.f32.mrb[0].mxu0
      %v420 = vpop.f32.mrb[0].mxu0
      %v421 = vpop.f32.mrb[0].mxu0
      %422 = vdwg.mxu0
      %v423 = vlaneseq
      %v424 = vand.u32 %v423, 127
      %vm425 = vcmp.lt.s32.totalorder %v424, 17
      %v426 = vpack.c.bf16 %v413, %v410
      %v427 = vpack.c.bf16 %v418, %v418
      %430 = vrot.lane.b32.xlu0 %v426, 96
      %v431 = vpop.permute.xlu0 %430
      %432 = vrot.lane.b32.xlu0 %v427, 96
      %v433 = vpop.permute.xlu0 %432
      %vm434 = vcmask 64512
      %v436 = vsel %vm434, %v426, 0
      %v439 = vsel %vm434, %v427, 0
      %v442 = vsel %vm434, %v431, 0
      %v445 = vsel %vm434, %v433, 0
      %447 = vmatprep.subr.bf16.mxu0 0
      %448 = vmatpush1.bf16.xpose.msra.mxu0 %v442
      %449 = vmatprep.subr.bf16.mxu0 0
      %450 = vmatpush1.bf16.xpose.msra.mxu0 %v445
      %451 = vmatprep.subr.bf16.mxu0 0
      %452 = vmatpush1.bf16.xpose.msra.mxu0 0
      %453 = vmatprep.subr.bf16.mxu0 0
      %454 = vmatpush1.bf16.xpose.msra.mxu0 0
      %455 = vmatprep.subr.bf16.mxu0 0
      %456 = vmatpush1.bf16.xpose.msra.mxu0 0
      %457 = vmatprep.subr.bf16.mxu0 0
      %458 = vmatpush1.bf16.xpose.msra.mxu0 0
      %459 = vmatprep.subr.bf16.mxu0 0
      %460 = vmatpush1.bf16.xpose.msra.mxu0 0
      %461 = vmatprep.subr.bf16.mxu0 0
      %462 = vmatpush1.bf16.xpose.msra.mxu0 0
      %463 = vmatprep.subr.bf16.mxu0 0
      %464 = vmatpush1.bf16.xpose.msra.mxu0 0
      %465 = vmatprep.subr.bf16.mxu0 0
      %466 = vmatpush1.bf16.xpose.msra.mxu0 0
      %467 = vmatprep.subr.bf16.mxu0 0
      %468 = vmatpush1.bf16.xpose.msra.mxu0 0
      %469 = vmatprep.subr.bf16.mxu0 0
      %470 = vmatpush1.bf16.xpose.msra.mxu0 0
      %471 = vmatprep.subr.bf16.mxu0 0
      %472 = vmatpush1.bf16.xpose.msra.mxu0 0
      %473 = vmatprep.subr.bf16.mxu0 0
      %474 = vmatpush1.bf16.xpose.msra.mxu0 0
      %475 = vmatprep.subr.bf16.mxu0 0
      %476 = vmatpush1.bf16.xpose.msra.mxu0 0
      %477 = vmatprep.subr.bf16.mxu0 0
      %478 = vmatpush1.bf16.xpose.msra.mxu0 0
      %479 = vmatprep.mubr.bf16.mxu0 0
      %480 = vmatmul.mubr.bf16.gmra.mrb[0].mxu0 %v436
      %v481 = vpop.f32.mrb[0].mxu0
      %v482 = vadd.f32 0.0, %v481
      %v483 = vpop.f32.mrb[0].mxu0
      %v484 = vpop.f32.mrb[0].mxu0
      %v485 = vadd.f32 0.0, %v484
      %v486 = vpop.f32.mrb[0].mxu0
      %487 = vmatprep.mubr.bf16.mxu0 0
      %488 = vmatmul.mubr.bf16.gmra.mrb[0].mxu0 %v439
      %v489 = vpop.f32.mrb[0].mxu0
      %v490 = vadd.f32 0.0, %v489
      %v491 = vpop.f32.mrb[0].mxu0
      %v492 = vpop.f32.mrb[0].mxu0
      %v493 = vpop.f32.mrb[0].mxu0
      %494 = vdwg.mxu0
      %v495 = vmul.f32 %v482, 0.35355338
      %v496 = vmul.f32 %v485, 0.35355338
      %v497 = vmul.f32 %v490, 0.35355338
      %v498 = vsel %vm425, %v495, -1e+30
      %v499 = vsel %vm425, %v496, -1e+30
      %v500 = vsel %vm425, %v497, -1e+30
      %vm501 = vcmask 195584
      %v502 = vsel %vm501, %v498, -inf
      %503 = vmax.xlane.f32.xlu0 %v502
      %v504 = vpop.xlane.xlu0 %503
      %v505 = vsel %vm501, %v499, -inf
      %506 = vmax.xlane.f32.xlu0 %v505
      %v507 = vpop.xlane.xlu0 %506
      %v508 = vsel %vm501, %v500, -inf
      %509 = vmax.xlane.f32.xlu0 %v508
      %v510 = vpop.xlane.xlu0 %509
      %v511 = vsub.f32 %v498, %v504
      %v512 = vsub.f32 %v499, %v507
      %v513 = vsub.f32 %v500, %v510
      %v514 = vmul.f32 %v511, 1.442695
      %v515 = vpow.pop %v514
      %v516 = vmul.f32 %v512, 1.442695
      %v517 = vpow.pop %v516
      %v518 = vmul.f32 %v513, 1.442695
      %v519 = vpow.pop %v518
      %v520 = vsel %vm501, %v515, 0.0
      %521 = vadd.xlane.f32.xlu0 %v520
      %v522 = vpop.xlane.xlu0 %521
      %v523 = vsel %vm501, %v517, 0.0
      %524 = vadd.xlane.f32.xlu0 %v523
      %v525 = vpop.xlane.xlu0 %524
      %v526 = vsel %vm501, %v519, 0.0
      %527 = vadd.xlane.f32.xlu0 %v526
      %v528 = vpop.xlane.xlu0 %527
      %v529 = vrcp.pop %v522
      %v530 = vrcp.pop %v525
      %v531 = vrcp.pop %v528
      %v532 = vmul.f32 %v515, %v529
      %v533 = vmul.f32 %v517, %v530
      %v534 = vmul.f32 %v519, %v531
      %v535 = vpack.c.bf16 %v533, %v532
      %v536 = vpack.c.bf16 %v534, %v534
      %537 = vrot.lane.b32.xlu0 %v426, 64
      %v538 = vpop.permute.xlu0 %537
      %539 = vrot.lane.b32.xlu0 %v427, 64
      %v540 = vpop.permute.xlu0 %539
      %v543 = vsel %vm501, %v535, 0
      %v546 = vsel %vm501, %v536, 0
      %vm548 = vcmask 1043456
      %v550 = vsel %vm548, %v540, 0
      %552 = vmatprep.subr.bf16.mxu0 0
      %553 = vmatpush1.bf16.msra.mxu0 %v538
      %554 = vmatprep.subr.bf16.mxu0 0
      %555 = vmatpush1.bf16.msra.mxu0 %v550
      %556 = vmatprep.subr.bf16.mxu0 0
      %557 = vmatpush1.bf16.msra.mxu0 0
      %558 = vmatprep.subr.bf16.mxu0 0
      %559 = vmatpush1.bf16.msra.mxu0 0
      %560 = vmatprep.subr.bf16.mxu0 0
      %561 = vmatpush1.bf16.msra.mxu0 0
      %562 = vmatprep.subr.bf16.mxu0 0
      %563 = vmatpush1.bf16.msra.mxu0 0
      %564 = vmatprep.subr.bf16.mxu0 0
      %565 = vmatpush1.bf16.msra.mxu0 0
      %566 = vmatprep.subr.bf16.mxu0 0
      %567 = vmatpush1.bf16.msra.mxu0 0
      %568 = vmatprep.subr.bf16.mxu0 0
      %569 = vmatpush1.bf16.msra.mxu0 0
      %570 = vmatprep.subr.bf16.mxu0 0
      %571 = vmatpush1.bf16.msra.mxu0 0
      %572 = vmatprep.subr.bf16.mxu0 0
      %573 = vmatpush1.bf16.msra.mxu0 0
      %574 = vmatprep.subr.bf16.mxu0 0
      %575 = vmatpush1.bf16.msra.mxu0 0
      %576 = vmatprep.subr.bf16.mxu0 0
      %577 = vmatpush1.bf16.msra.mxu0 0
      %578 = vmatprep.subr.bf16.mxu0 0
      %579 = vmatpush1.bf16.msra.mxu0 0
      %580 = vmatprep.subr.bf16.mxu0 0
      %581 = vmatpush1.bf16.msra.mxu0 0
      %582 = vmatprep.subr.bf16.mxu0 0
      %583 = vmatpush1.bf16.msra.mxu0 0
      %584 = vmatprep.mubr.bf16.mxu0 0
      %585 = vmatmul.mubr.bf16.gmra.mrb[0].mxu0 %v543
      %v586 = vpop.f32.mrb[0].mxu0
      %v587 = vadd.f32 0.0, %v586
      %v588 = vpop.f32.mrb[0].mxu0
      %v589 = vpop.f32.mrb[0].mxu0
      %v590 = vadd.f32 0.0, %v589
      %v591 = vpop.f32.mrb[0].mxu0
      %592 = vmatprep.mubr.bf16.mxu0 0
      %593 = vmatmul.mubr.bf16.gmra.mrb[0].mxu0 %v546
      %v594 = vpop.f32.mrb[0].mxu0
      %v595 = vadd.f32 0.0, %v594
      %v596 = vpop.f32.mrb[0].mxu0
      %v597 = vpop.f32.mrb[0].mxu0
      %v598 = vpop.f32.mrb[0].mxu0
      %599 = vdwg.mxu0
      %600 = vrot.lane.b32.xlu0 %v426, 120
      %v601 = vpop.permute.xlu0 %600
      %602 = vrot.lane.b32.xlu0 %v427, 120
      %v603 = vpop.permute.xlu0 %602
      %604 = vrot.lane.b32.xlu0 %v426, 88
      %v605 = vpop.permute.xlu0 %604
      %606 = vrot.lane.b32.xlu0 %v427, 88
      %v607 = vpop.permute.xlu0 %606
      %v609 = vsel %vm434, %v601, 0
      %v612 = vsel %vm434, %v603, 0
      %v615 = vsel %vm434, %v605, 0
      %v618 = vsel %vm434, %v607, 0
      %620 = vmatprep.subr.bf16.mxu0 0
      %621 = vmatpush1.bf16.xpose.msra.mxu0 %v615
      %622 = vmatprep.subr.bf16.mxu0 0
      %623 = vmatpush1.bf16.xpose.msra.mxu0 %v618
      %624 = vmatprep.subr.bf16.mxu0 0
      %625 = vmatpush1.bf16.xpose.msra.mxu0 0
      %626 = vmatprep.subr.bf16.mxu0 0
      %627 = vmatpush1.bf16.xpose.msra.mxu0 0
      %628 = vmatprep.subr.bf16.mxu0 0
      %629 = vmatpush1.bf16.xpose.msra.mxu0 0
      %630 = vmatprep.subr.bf16.mxu0 0
      %631 = vmatpush1.bf16.xpose.msra.mxu0 0
      %632 = vmatprep.subr.bf16.mxu0 0
      %633 = vmatpush1.bf16.xpose.msra.mxu0 0
      %634 = vmatprep.subr.bf16.mxu0 0
      %635 = vmatpush1.bf16.xpose.msra.mxu0 0
      %636 = vmatprep.subr.bf16.mxu0 0
      %637 = vmatpush1.bf16.xpose.msra.mxu0 0
      %638 = vmatprep.subr.bf16.mxu0 0
      %639 = vmatpush1.bf16.xpose.msra.mxu0 0
      %640 = vmatprep.subr.bf16.mxu0 0
      %641 = vmatpush1.bf16.xpose.msra.mxu0 0
      %642 = vmatprep.subr.bf16.mxu0 0
      %643 = vmatpush1.bf16.xpose.msra.mxu0 0
      %644 = vmatprep.subr.bf16.mxu0 0
      %645 = vmatpush1.bf16.xpose.msra.mxu0 0
      %646 = vmatprep.subr.bf16.mxu0 0
      %647 = vmatpush1.bf16.xpose.msra.mxu0 0
      %648 = vmatprep.subr.bf16.mxu0 0
      %649 = vmatpush1.bf16.xpose.msra.mxu0 0
      %650 = vmatprep.subr.bf16.mxu0 0
      %651 = vmatpush1.bf16.xpose.msra.mxu0 0
      %652 = vmatprep.mubr.bf16.mxu0 0
      %653 = vmatmul.mubr.bf16.gmra.mrb[0].mxu0 %v609
      %v654 = vpop.f32.mrb[0].mxu0
      %v655 = vadd.f32 0.0, %v654
      %v656 = vpop.f32.mrb[0].mxu0
      %v657 = vpop.f32.mrb[0].mxu0
      %v658 = vadd.f32 0.0, %v657
      %v659 = vpop.f32.mrb[0].mxu0
      %660 = vmatprep.mubr.bf16.mxu0 0
      %661 = vmatmul.mubr.bf16.gmra.mrb[0].mxu0 %v612
      %v662 = vpop.f32.mrb[0].mxu0
      %v663 = vadd.f32 0.0, %v662
      %v664 = vpop.f32.mrb[0].mxu0
      %v665 = vpop.f32.mrb[0].mxu0
      %v666 = vpop.f32.mrb[0].mxu0
      %667 = vdwg.mxu0
      %v668 = vmul.f32 %v655, 0.35355338
      %v669 = vmul.f32 %v658, 0.35355338
      %v670 = vmul.f32 %v663, 0.35355338
      %v671 = vsel %vm425, %v668, -1e+30
      %v672 = vsel %vm425, %v669, -1e+30
      %v673 = vsel %vm425, %v670, -1e+30
      %v674 = vsel %vm501, %v671, -inf
      %675 = vmax.xlane.f32.xlu0 %v674
      %v676 = vpop.xlane.xlu0 %675
      %v677 = vsel %vm501, %v672, -inf
      %678 = vmax.xlane.f32.xlu0 %v677
      %v679 = vpop.xlane.xlu0 %678
      %v680 = vsel %vm501, %v673, -inf
      %681 = vmax.xlane.f32.xlu0 %v680
      %v682 = vpop.xlane.xlu0 %681
      %v683 = vsub.f32 %v671, %v676
      %v684 = vsub.f32 %v672, %v679
      %v685 = vsub.f32 %v673, %v682
      %v686 = vmul.f32 %v683, 1.442695
      %v687 = vpow.pop %v686
      %v688 = vmul.f32 %v684, 1.442695
      %v689 = vpow.pop %v688
      %v690 = vmul.f32 %v685, 1.442695
      %v691 = vpow.pop %v690
      %v692 = vsel %vm501, %v687, 0.0
      %693 = vadd.xlane.f32.xlu0 %v692
      %v694 = vpop.xlane.xlu0 %693
      %v695 = vsel %vm501, %v689, 0.0
      %696 = vadd.xlane.f32.xlu0 %v695
      %v697 = vpop.xlane.xlu0 %696
      %v698 = vsel %vm501, %v691, 0.0
      %699 = vadd.xlane.f32.xlu0 %v698
      %v700 = vpop.xlane.xlu0 %699
      %v701 = vrcp.pop %v694
      %v702 = vrcp.pop %v697
      %v703 = vrcp.pop %v700
      %v704 = vmul.f32 %v687, %v701
      %v705 = vmul.f32 %v689, %v702
      %v706 = vmul.f32 %v691, %v703
      %v707 = vpack.c.bf16 %v705, %v704
      %v708 = vpack.c.bf16 %v706, %v706
      %709 = vrot.lane.b32.xlu0 %v426, 56
      %v710 = vpop.permute.xlu0 %709
      %711 = vrot.lane.b32.xlu0 %v427, 56
      %v712 = vpop.permute.xlu0 %711
      %v715 = vsel %vm501, %v707, 0
      %v718 = vsel %vm501, %v708, 0
      %v721 = vsel %vm548, %v712, 0
      %723 = vmatprep.subr.bf16.mxu0 0
      %724 = vmatpush1.bf16.msra.mxu0 %v710
      %725 = vmatprep.subr.bf16.mxu0 0
      %726 = vmatpush1.bf16.msra.mxu0 %v721
      %727 = vmatprep.subr.bf16.mxu0 0
      %728 = vmatpush1.bf16.msra.mxu0 0
      %729 = vmatprep.subr.bf16.mxu0 0
      %730 = vmatpush1.bf16.msra.mxu0 0
      %731 = vmatprep.subr.bf16.mxu0 0
      %732 = vmatpush1.bf16.msra.mxu0 0
      %733 = vmatprep.subr.bf16.mxu0 0
      %734 = vmatpush1.bf16.msra.mxu0 0
      %735 = vmatprep.subr.bf16.mxu0 0
      %736 = vmatpush1.bf16.msra.mxu0 0
      %737 = vmatprep.subr.bf16.mxu0 0
      %738 = vmatpush1.bf16.msra.mxu0 0
      %739 = vmatprep.subr.bf16.mxu0 0
      %740 = vmatpush1.bf16.msra.mxu0 0
      %741 = vmatprep.subr.bf16.mxu0 0
      %742 = vmatpush1.bf16.msra.mxu0 0
      %743 = vmatprep.subr.bf16.mxu0 0
      %744 = vmatpush1.bf16.msra.mxu0 0
      %745 = vmatprep.subr.bf16.mxu0 0
      %746 = vmatpush1.bf16.msra.mxu0 0
      %747 = vmatprep.subr.bf16.mxu0 0
      %748 = vmatpush1.bf16.msra.mxu0 0
      %749 = vmatprep.subr.bf16.mxu0 0
      %750 = vmatpush1.bf16.msra.mxu0 0
      %751 = vmatprep.subr.bf16.mxu0 0
      %752 = vmatpush1.bf16.msra.mxu0 0
      %753 = vmatprep.subr.bf16.mxu0 0
      %754 = vmatpush1.bf16.msra.mxu0 0
      %755 = vmatprep.mubr.bf16.mxu0 0
      %756 = vmatmul.mubr.bf16.gmra.mrb[0].mxu0 %v715
      %v757 = vpop.f32.mrb[0].mxu0
      %v758 = vadd.f32 0.0, %v757
      %v759 = vpop.f32.mrb[0].mxu0
      %v760 = vpop.f32.mrb[0].mxu0
      %v761 = vadd.f32 0.0, %v760
      %v762 = vpop.f32.mrb[0].mxu0
      %763 = vmatprep.mubr.bf16.mxu0 0
      %764 = vmatmul.mubr.bf16.gmra.mrb[0].mxu0 %v718
      %v765 = vpop.f32.mrb[0].mxu0
      %v766 = vadd.f32 0.0, %v765
      %v767 = vpop.f32.mrb[0].mxu0
      %v768 = vpop.f32.mrb[0].mxu0
      %v769 = vpop.f32.mrb[0].mxu0
      %770 = vdwg.mxu0
      %771 = vrot.lane.b32.xlu0 %v426, 112
      %v772 = vpop.permute.xlu0 %771
      %773 = vrot.lane.b32.xlu0 %v427, 112
      %v774 = vpop.permute.xlu0 %773
      %775 = vrot.lane.b32.xlu0 %v426, 80
      %v776 = vpop.permute.xlu0 %775
      %777 = vrot.lane.b32.xlu0 %v427, 80
      %v778 = vpop.permute.xlu0 %777
      %v780 = vsel %vm434, %v772, 0
      %v783 = vsel %vm434, %v774, 0
      %v786 = vsel %vm434, %v776, 0
      %v789 = vsel %vm434, %v778, 0
      %791 = vmatprep.subr.bf16.mxu0 0
      %792 = vmatpush1.bf16.xpose.msra.mxu0 %v786
      %793 = vmatprep.subr.bf16.mxu0 0
      %794 = vmatpush1.bf16.xpose.msra.mxu0 %v789
      %795 = vmatprep.subr.bf16.mxu0 0
      %796 = vmatpush1.bf16.xpose.msra.mxu0 0
      %797 = vmatprep.subr.bf16.mxu0 0
      %798 = vmatpush1.bf16.xpose.msra.mxu0 0
      %799 = vmatprep.subr.bf16.mxu0 0
      %800 = vmatpush1.bf16.xpose.msra.mxu0 0
      %801 = vmatprep.subr.bf16.mxu0 0
      %802 = vmatpush1.bf16.xpose.msra.mxu0 0
      %803 = vmatprep.subr.bf16.mxu0 0
      %804 = vmatpush1.bf16.xpose.msra.mxu0 0
      %805 = vmatprep.subr.bf16.mxu0 0
      %806 = vmatpush1.bf16.xpose.msra.mxu0 0
      %807 = vmatprep.subr.bf16.mxu0 0
      %808 = vmatpush1.bf16.xpose.msra.mxu0 0
      %809 = vmatprep.subr.bf16.mxu0 0
      %810 = vmatpush1.bf16.xpose.msra.mxu0 0
      %811 = vmatprep.subr.bf16.mxu0 0
      %812 = vmatpush1.bf16.xpose.msra.mxu0 0
      %813 = vmatprep.subr.bf16.mxu0 0
      %814 = vmatpush1.bf16.xpose.msra.mxu0 0
      %815 = vmatprep.subr.bf16.mxu0 0
      %816 = vmatpush1.bf16.xpose.msra.mxu0 0
      %817 = vmatprep.subr.bf16.mxu0 0
      %818 = vmatpush1.bf16.xpose.msra.mxu0 0
      %819 = vmatprep.subr.bf16.mxu0 0
      %820 = vmatpush1.bf16.xpose.msra.mxu0 0
      %821 = vmatprep.subr.bf16.mxu0 0
      %822 = vmatpush1.bf16.xpose.msra.mxu0 0
      %823 = vmatprep.mubr.bf16.mxu0 0
      %824 = vmatmul.mubr.bf16.gmra.mrb[0].mxu0 %v780
      %v825 = vpop.f32.mrb[0].mxu0
      %v826 = vadd.f32 0.0, %v825
      %v827 = vpop.f32.mrb[0].mxu0
      %v828 = vpop.f32.mrb[0].mxu0
      %v829 = vadd.f32 0.0, %v828
      %v830 = vpop.f32.mrb[0].mxu0
      %831 = vmatprep.mubr.bf16.mxu0 0
      %832 = vmatmul.mubr.bf16.gmra.mrb[0].mxu0 %v783
      %v833 = vpop.f32.mrb[0].mxu0
      %v834 = vadd.f32 0.0, %v833
      %v835 = vpop.f32.mrb[0].mxu0
      %v836 = vpop.f32.mrb[0].mxu0
      %v837 = vpop.f32.mrb[0].mxu0
      %838 = vdwg.mxu0
      %v839 = vmul.f32 %v826, 0.35355338
      %v840 = vmul.f32 %v829, 0.35355338
      %v841 = vmul.f32 %v834, 0.35355338
      %v842 = vsel %vm425, %v839, -1e+30
      %v843 = vsel %vm425, %v840, -1e+30
      %v844 = vsel %vm425, %v841, -1e+30
      %v845 = vsel %vm501, %v842, -inf
      %846 = vmax.xlane.f32.xlu0 %v845
      %v847 = vpop.xlane.xlu0 %846
      %v848 = vsel %vm501, %v843, -inf
      %849 = vmax.xlane.f32.xlu0 %v848
      %v850 = vpop.xlane.xlu0 %849
      %v851 = vsel %vm501, %v844, -inf
      %852 = vmax.xlane.f32.xlu0 %v851
      %v853 = vpop.xlane.xlu0 %852
      %v854 = vsub.f32 %v842, %v847
      %v855 = vsub.f32 %v843, %v850
      %v856 = vsub.f32 %v844, %v853
      %v857 = vmul.f32 %v854, 1.442695
      %v858 = vpow.pop %v857
      %v859 = vmul.f32 %v855, 1.442695
      %v860 = vpow.pop %v859
      %v861 = vmul.f32 %v856, 1.442695
      %v862 = vpow.pop %v861
      %v863 = vsel %vm501, %v858, 0.0
      %864 = vadd.xlane.f32.xlu0 %v863
      %v865 = vpop.xlane.xlu0 %864
      %v866 = vsel %vm501, %v860, 0.0
      %867 = vadd.xlane.f32.xlu0 %v866
      %v868 = vpop.xlane.xlu0 %867
      %v869 = vsel %vm501, %v862, 0.0
      %870 = vadd.xlane.f32.xlu0 %v869
      %v871 = vpop.xlane.xlu0 %870
      %v872 = vrcp.pop %v865
      %v873 = vrcp.pop %v868
      %v874 = vrcp.pop %v871
      %v875 = vmul.f32 %v858, %v872
      %v876 = vmul.f32 %v860, %v873
      %v877 = vmul.f32 %v862, %v874
      %v878 = vpack.c.bf16 %v876, %v875
      %v879 = vpack.c.bf16 %v877, %v877
      %880 = vrot.lane.b32.xlu0 %v426, 48
      %v881 = vpop.permute.xlu0 %880
      %882 = vrot.lane.b32.xlu0 %v427, 48
      %v883 = vpop.permute.xlu0 %882
      %v886 = vsel %vm501, %v878, 0
      %v889 = vsel %vm501, %v879, 0
      %v892 = vsel %vm548, %v883, 0
      %894 = vmatprep.subr.bf16.mxu0 0
      %895 = vmatpush1.bf16.msra.mxu0 %v881
      %896 = vmatprep.subr.bf16.mxu0 0
      %897 = vmatpush1.bf16.msra.mxu0 %v892
      %898 = vmatprep.subr.bf16.mxu0 0
      %899 = vmatpush1.bf16.msra.mxu0 0
      %900 = vmatprep.subr.bf16.mxu0 0
      %901 = vmatpush1.bf16.msra.mxu0 0
      %902 = vmatprep.subr.bf16.mxu0 0
      %903 = vmatpush1.bf16.msra.mxu0 0
      %904 = vmatprep.subr.bf16.mxu0 0
      %905 = vmatpush1.bf16.msra.mxu0 0
      %906 = vmatprep.subr.bf16.mxu0 0
      %907 = vmatpush1.bf16.msra.mxu0 0
      %908 = vmatprep.subr.bf16.mxu0 0
      %909 = vmatpush1.bf16.msra.mxu0 0
      %910 = vmatprep.subr.bf16.mxu0 0
      %911 = vmatpush1.bf16.msra.mxu0 0
      %912 = vmatprep.subr.bf16.mxu0 0
      %913 = vmatpush1.bf16.msra.mxu0 0
      %914 = vmatprep.subr.bf16.mxu0 0
      %915 = vmatpush1.bf16.msra.mxu0 0
      %916 = vmatprep.subr.bf16.mxu0 0
      %917 = vmatpush1.bf16.msra.mxu0 0
      %918 = vmatprep.subr.bf16.mxu0 0
      %919 = vmatpush1.bf16.msra.mxu0 0
      %920 = vmatprep.subr.bf16.mxu0 0
      %921 = vmatpush1.bf16.msra.mxu0 0
      %922 = vmatprep.subr.bf16.mxu0 0
      %923 = vmatpush1.bf16.msra.mxu0 0
      %924 = vmatprep.subr.bf16.mxu0 0
      %925 = vmatpush1.bf16.msra.mxu0 0
      %926 = vmatprep.mubr.bf16.mxu0 0
      %927 = vmatmul.mubr.bf16.gmra.mrb[0].mxu0 %v886
      %v928 = vpop.f32.mrb[0].mxu0
      %v929 = vadd.f32 0.0, %v928
      %v930 = vpop.f32.mrb[0].mxu0
      %v931 = vpop.f32.mrb[0].mxu0
      %v932 = vadd.f32 0.0, %v931
      %v933 = vpop.f32.mrb[0].mxu0
      %934 = vmatprep.mubr.bf16.mxu0 0
      %935 = vmatmul.mubr.bf16.gmra.mrb[0].mxu0 %v889
      %v936 = vpop.f32.mrb[0].mxu0
      %v937 = vadd.f32 0.0, %v936
      %v938 = vpop.f32.mrb[0].mxu0
      %v939 = vpop.f32.mrb[0].mxu0
      %v940 = vpop.f32.mrb[0].mxu0
      %941 = vdwg.mxu0
      %942 = vrot.lane.b32.xlu0 %v426, 104
      %v943 = vpop.permute.xlu0 %942
      %944 = vrot.lane.b32.xlu0 %v427, 104
      %v945 = vpop.permute.xlu0 %944
      %946 = vrot.lane.b32.xlu0 %v426, 72
      %v947 = vpop.permute.xlu0 %946
      %948 = vrot.lane.b32.xlu0 %v427, 72
      %v949 = vpop.permute.xlu0 %948
      %v951 = vsel %vm434, %v943, 0
      %v954 = vsel %vm434, %v945, 0
      %v957 = vsel %vm434, %v947, 0
      %v960 = vsel %vm434, %v949, 0
      %962 = vmatprep.subr.bf16.mxu0 0
      %963 = vmatpush1.bf16.xpose.msra.mxu0 %v957
      %964 = vmatprep.subr.bf16.mxu0 0
      %965 = vmatpush1.bf16.xpose.msra.mxu0 %v960
      %966 = vmatprep.subr.bf16.mxu0 0
      %967 = vmatpush1.bf16.xpose.msra.mxu0 0
      %968 = vmatprep.subr.bf16.mxu0 0
      %969 = vmatpush1.bf16.xpose.msra.mxu0 0
      %970 = vmatprep.subr.bf16.mxu0 0
      %971 = vmatpush1.bf16.xpose.msra.mxu0 0
      %972 = vmatprep.subr.bf16.mxu0 0
      %973 = vmatpush1.bf16.xpose.msra.mxu0 0
      %974 = vmatprep.subr.bf16.mxu0 0
      %975 = vmatpush1.bf16.xpose.msra.mxu0 0
      %976 = vmatprep.subr.bf16.mxu0 0
      %977 = vmatpush1.bf16.xpose.msra.mxu0 0
      %978 = vmatprep.subr.bf16.mxu0 0
      %979 = vmatpush1.bf16.xpose.msra.mxu0 0
      %980 = vmatprep.subr.bf16.mxu0 0
      %981 = vmatpush1.bf16.xpose.msra.mxu0 0
      %982 = vmatprep.subr.bf16.mxu0 0
      %983 = vmatpush1.bf16.xpose.msra.mxu0 0
      %984 = vmatprep.subr.bf16.mxu0 0
      %985 = vmatpush1.bf16.xpose.msra.mxu0 0
      %986 = vmatprep.subr.bf16.mxu0 0
      %987 = vmatpush1.bf16.xpose.msra.mxu0 0
      %988 = vmatprep.subr.bf16.mxu0 0
      %989 = vmatpush1.bf16.xpose.msra.mxu0 0
      %990 = vmatprep.subr.bf16.mxu0 0
      %991 = vmatpush1.bf16.xpose.msra.mxu0 0
      %992 = vmatprep.subr.bf16.mxu0 0
      %993 = vmatpush1.bf16.xpose.msra.mxu0 0
      %994 = vmatprep.mubr.bf16.mxu0 0
      %995 = vmatmul.mubr.bf16.gmra.mrb[0].mxu0 %v951
      %v996 = vpop.f32.mrb[0].mxu0
      %v997 = vadd.f32 0.0, %v996
      %v998 = vpop.f32.mrb[0].mxu0
      %v999 = vpop.f32.mrb[0].mxu0
      %v1000 = vadd.f32 0.0, %v999
      %v1001 = vpop.f32.mrb[0].mxu0
      %1002 = vmatprep.mubr.bf16.mxu0 0
      %1003 = vmatmul.mubr.bf16.gmra.mrb[0].mxu0 %v954
      %v1004 = vpop.f32.mrb[0].mxu0
      %v1005 = vadd.f32 0.0, %v1004
      %v1006 = vpop.f32.mrb[0].mxu0
      %v1007 = vpop.f32.mrb[0].mxu0
      %v1008 = vpop.f32.mrb[0].mxu0
      %1009 = vdwg.mxu0
      %v1010 = vmul.f32 %v997, 0.35355338
      %v1011 = vmul.f32 %v1000, 0.35355338
      %v1012 = vmul.f32 %v1005, 0.35355338
      %v1013 = vsel %vm425, %v1010, -1e+30
      %v1014 = vsel %vm425, %v1011, -1e+30
      %v1015 = vsel %vm425, %v1012, -1e+30
      %v1016 = vsel %vm501, %v1013, -inf
      %1017 = vmax.xlane.f32.xlu0 %v1016
      %v1018 = vpop.xlane.xlu0 %1017
      %v1019 = vsel %vm501, %v1014, -inf
      %1020 = vmax.xlane.f32.xlu0 %v1019
      %v1021 = vpop.xlane.xlu0 %1020
      %v1022 = vsel %vm501, %v1015, -inf
      %1023 = vmax.xlane.f32.xlu0 %v1022
      %v1024 = vpop.xlane.xlu0 %1023
      %v1025 = vsub.f32 %v1013, %v1018
      %v1026 = vsub.f32 %v1014, %v1021
      %v1027 = vsub.f32 %v1015, %v1024
      %v1028 = vmul.f32 %v1025, 1.442695
      %v1029 = vpow.pop %v1028
      %v1030 = vmul.f32 %v1026, 1.442695
      %v1031 = vpow.pop %v1030
      %v1032 = vmul.f32 %v1027, 1.442695
      %v1033 = vpow.pop %v1032
      %v1034 = vsel %vm501, %v1029, 0.0
      %1035 = vadd.xlane.f32.xlu0 %v1034
      %v1036 = vpop.xlane.xlu0 %1035
      %v1037 = vsel %vm501, %v1031, 0.0
      %1038 = vadd.xlane.f32.xlu0 %v1037
      %v1039 = vpop.xlane.xlu0 %1038
      %v1040 = vsel %vm501, %v1033, 0.0
      %1041 = vadd.xlane.f32.xlu0 %v1040
      %v1042 = vpop.xlane.xlu0 %1041
      %v1043 = vrcp.pop %v1036
      %v1044 = vrcp.pop %v1039
      %v1045 = vrcp.pop %v1042
      %v1046 = vmul.f32 %v1029, %v1043
      %v1047 = vmul.f32 %v1031, %v1044
      %v1048 = vmul.f32 %v1033, %v1045
      %v1049 = vpack.c.bf16 %v1047, %v1046
      %v1050 = vpack.c.bf16 %v1048, %v1048
      %1051 = vrot.lane.b32.xlu0 %v426, 40
      %v1052 = vpop.permute.xlu0 %1051
      %1053 = vrot.lane.b32.xlu0 %v427, 40
      %v1054 = vpop.permute.xlu0 %1053
      %v1057 = vsel %vm501, %v1049, 0
      %v1060 = vsel %vm501, %v1050, 0
      %v1063 = vsel %vm548, %v1054, 0
      %1065 = vmatprep.subr.bf16.mxu0 0
      %1066 = vmatpush1.bf16.msra.mxu0 %v1052
      %1067 = vmatprep.subr.bf16.mxu0 0
      %1068 = vmatpush1.bf16.msra.mxu0 %v1063
      %1069 = vmatprep.subr.bf16.mxu0 0
      %1070 = vmatpush1.bf16.msra.mxu0 0
      %1071 = vmatprep.subr.bf16.mxu0 0
      %1072 = vmatpush1.bf16.msra.mxu0 0
      %1073 = vmatprep.subr.bf16.mxu0 0
      %1074 = vmatpush1.bf16.msra.mxu0 0
      %1075 = vmatprep.subr.bf16.mxu0 0
      %1076 = vmatpush1.bf16.msra.mxu0 0
      %1077 = vmatprep.subr.bf16.mxu0 0
      %1078 = vmatpush1.bf16.msra.mxu0 0
      %1079 = vmatprep.subr.bf16.mxu0 0
      %1080 = vmatpush1.bf16.msra.mxu0 0
      %1081 = vmatprep.subr.bf16.mxu0 0
      %1082 = vmatpush1.bf16.msra.mxu0 0
      %1083 = vmatprep.subr.bf16.mxu0 0
      %1084 = vmatpush1.bf16.msra.mxu0 0
      %1085 = vmatprep.subr.bf16.mxu0 0
      %1086 = vmatpush1.bf16.msra.mxu0 0
      %1087 = vmatprep.subr.bf16.mxu0 0
      %1088 = vmatpush1.bf16.msra.mxu0 0
      %1089 = vmatprep.subr.bf16.mxu0 0
      %1090 = vmatpush1.bf16.msra.mxu0 0
      %1091 = vmatprep.subr.bf16.mxu0 0
      %1092 = vmatpush1.bf16.msra.mxu0 0
      %1093 = vmatprep.subr.bf16.mxu0 0
      %1094 = vmatpush1.bf16.msra.mxu0 0
      %1095 = vmatprep.subr.bf16.mxu0 0
      %1096 = vmatpush1.bf16.msra.mxu0 0
      %1097 = vmatprep.mubr.bf16.mxu0 0
      %1098 = vmatmul.mubr.bf16.gmra.mrb[0].mxu0 %v1057
      %v1099 = vpop.f32.mrb[0].mxu0
      %v1100 = vadd.f32 0.0, %v1099
      %v1101 = vpop.f32.mrb[0].mxu0
      %v1102 = vpop.f32.mrb[0].mxu0
      %v1103 = vadd.f32 0.0, %v1102
      %v1104 = vpop.f32.mrb[0].mxu0
      %1105 = vmatprep.mubr.bf16.mxu0 0
      %1106 = vmatmul.mubr.bf16.gmra.mrb[0].mxu0 %v1060
      %v1107 = vpop.f32.mrb[0].mxu0
      %v1108 = vadd.f32 0.0, %v1107
      %v1109 = vpop.f32.mrb[0].mxu0
      %v1110 = vpop.f32.mrb[0].mxu0
      %v1111 = vpop.f32.mrb[0].mxu0
      %1112 = vdwg.mxu0
      %1116 = vrot.lane.b32.xlu0 %v758, 8
      %v1117 = vpop.permute.xlu0 %1116
      %1118 = vrot.lane.b32.xlu0 %v761, 8
      %v1119 = vpop.permute.xlu0 %1118
      %1120 = vrot.lane.b32.xlu0 %v766, 8
      %v1121 = vpop.permute.xlu0 %1120
      %1128 = vrot.lane.b32.xlu0 %v929, 16
      %v1129 = vpop.permute.xlu0 %1128
      %1130 = vrot.lane.b32.xlu0 %v932, 16
      %v1131 = vpop.permute.xlu0 %1130
      %1132 = vrot.lane.b32.xlu0 %v937, 16
      %v1133 = vpop.permute.xlu0 %1132
      %1140 = vrot.lane.b32.xlu0 %v1100, 24
      %v1141 = vpop.permute.xlu0 %1140
      %1142 = vrot.lane.b32.xlu0 %v1103, 24
      %v1143 = vpop.permute.xlu0 %1142
      %1144 = vrot.lane.b32.xlu0 %v1108, 24
      %v1145 = vpop.permute.xlu0 %1144
      %v1149 = vsel %vm434, %v587, %v1117
      %v1150 = vsel %vm434, %v590, %v1119
      %v1151 = vsel %vm434, %v595, %v1121
      %vm1152 = vcmask 130048
      %v1153 = vsel %vm1152, %v1149, %v1129
      %v1154 = vsel %vm1152, %v1150, %v1131
      %v1155 = vsel %vm1152, %v1151, %v1133
      %v1156 = vsel %vm501, %v1153, %v1141
      %v1157 = vsel %vm501, %v1154, %v1143
      %v1158 = vsel %vm501, %v1155, %v1145
      %v1159 = vpack.c.bf16 %v1157, %v1156
      %v1160 = vpack.c.bf16 %v1158, %v1158
      %v1161 = vld [vmem:[%s5] sm:$0xf]
      %v1162 = vld [vmem:[%s5 + $0x4] sm:$0xf]
      %v1163 = vld [vmem:[%s5 + $0x8] sm:$0xf]
      %v1164 = vld [vmem:[%s5 + $0xc] sm:$0xf]
      %v1165 = vld [vmem:[%s6] sm:$0x1]
      %v1167 = vlaneseq
      %v1168 = vshrl.u32 %v1167, 7
      %v1169 = vsub.s32 0, %v1168
      %v1170 = vrot.slane %v1165, %v1169
      %v1176 = vunpack.c.l.b16 %v1161
      %v1177 = vunpack.c.l.b16 %v1162
      %v1178 = vunpack.c.l.b16 %v1163
      %v1179 = vunpack.c.l.b16 %v1164
      %v1180 = vpack.c.b16 %v1177, %v1176
      %v1181 = vpack.c.b16 %v1179, %v1178
      %v1185 = vsel %vm285, %v1159, 0
      %v1188 = vsel %vm285, %v1160, 0
      %1190 = vmatprep.subr.bf16.mxu0 0
      %1191 = vmatpush1.bf16.msra.mxu0 %v1180
      %1192 = vmatprep.subr.bf16.mxu0 0
      %1193 = vmatpush1.bf16.msra.mxu0 %v1181
      %1194 = vmatprep.subr.bf16.mxu0 0
      %1195 = vmatpush1.bf16.msra.mxu0 0
      %1196 = vmatprep.subr.bf16.mxu0 0
      %1197 = vmatpush1.bf16.msra.mxu0 0
      %1198 = vmatprep.subr.bf16.mxu0 0
      %1199 = vmatpush1.bf16.msra.mxu0 0
      %1200 = vmatprep.subr.bf16.mxu0 0
      %1201 = vmatpush1.bf16.msra.mxu0 0
      %1202 = vmatprep.subr.bf16.mxu0 0
      %1203 = vmatpush1.bf16.msra.mxu0 0
      %1204 = vmatprep.subr.bf16.mxu0 0
      %1205 = vmatpush1.bf16.msra.mxu0 0
      %1206 = vmatprep.subr.bf16.mxu0 0
      %1207 = vmatpush1.bf16.msra.mxu0 0
      %1208 = vmatprep.subr.bf16.mxu0 0
      %1209 = vmatpush1.bf16.msra.mxu0 0
      %1210 = vmatprep.subr.bf16.mxu0 0
      %1211 = vmatpush1.bf16.msra.mxu0 0
      %1212 = vmatprep.subr.bf16.mxu0 0
      %1213 = vmatpush1.bf16.msra.mxu0 0
      %1214 = vmatprep.subr.bf16.mxu0 0
      %1215 = vmatpush1.bf16.msra.mxu0 0
      %1216 = vmatprep.subr.bf16.mxu0 0
      %1217 = vmatpush1.bf16.msra.mxu0 0
      %1218 = vmatprep.subr.bf16.mxu0 0
      %1219 = vmatpush1.bf16.msra.mxu0 0
      %1220 = vmatprep.subr.bf16.mxu0 0
      %1221 = vmatpush1.bf16.msra.mxu0 0
      %1222 = vmatprep.mubr.bf16.mxu0 0
      %1223 = vmatmul.mubr.bf16.gmra.mrb[0].mxu0 %v1185
      %v1224 = vpop.f32.mrb[0].mxu0
      %v1225 = vadd.f32 %v1170, %v1224
      %v1226 = vpop.f32.mrb[0].mxu0
      %v1227 = vpop.f32.mrb[0].mxu0
      %v1228 = vadd.f32 %v1170, %v1227
      %v1229 = vpop.f32.mrb[0].mxu0
      %1230 = vmatprep.mubr.bf16.mxu0 0
      %1231 = vmatmul.mubr.bf16.gmra.mrb[0].mxu0 %v1188
      %v1232 = vpop.f32.mrb[0].mxu0
      %v1233 = vadd.f32 %v1170, %v1232
      %v1234 = vpop.f32.mrb[0].mxu0
      %v1235 = vpop.f32.mrb[0].mxu0
      %v1236 = vpop.f32.mrb[0].mxu0
      %1237 = vdwg.mxu0
      %v1238 = vadd.f32 %v280, %v1225
      %v1239 = vadd.f32 %v281, %v1228
      %v1240 = vadd.f32 %v282, %v1233
      %1241 = vst.msk [vmem:[%s278] sm:$0xff] %vm285, %v1238
      %1242 = vst.msk [vmem:[%s278 + $0x8] sm:$0xff] %vm285, %v1239
      %1243 = vst.msk [vmem:[%s278 + $0x10] sm:$0xff] %vm285, %v1240
      %p1244 = scmp.lt.s32.totalorder %s18, 1
      %s1245 = scalar_select %p1244, %s18, 1
      %s1246 = smul.addr %s1245, 3
      %s1247 = smul.addr %s1246, 8
      %s1248 = scalar_lea.vmem %s7, %s1247
      // Predicated region
      $region49: #{clip_penultimate_forward.9} parent=47 // pred_check
        %p1249 = pneg %p188
      $region50: #{clip_penultimate_forward.9} parent=47 // pred_check_branch
        %1251 = sbr.rel (%p1249) target = $region52
      $region51: #{clip_penultimate_forward.9} parent=47 // pred_region
        _
      $region52: #{clip_penultimate_forward.9} parent=47 // pred_fallthru
        _
    $region48: #{clip_penultimate_forward.9} parent=5 // pred_fallthru
      _
    %p1252 = scmp.le.s32.totalorder 2, %s13
    // Predicated region
    $region53: #{clip_penultimate_forward.9} parent=5 // pred_check
      %p1253 = pneg %p1252
    $region54: #{clip_penultimate_forward.9} parent=5 // pred_check_branch
      %1255 = sbr.rel (%p1253) target = $region56
    $region55: #{clip_penultimate_forward.9} parent=5 // pred_region
      %s1256 = ssub.s32 %s13, 2
      // Predicated region
      $region57: #{clip_penultimate_forward.9} parent=55 // pred_check
        %p1257 = pneg %p194
      $region58: #{clip_penultimate_forward.9} parent=55 // pred_check_branch
        %1259 = sbr.rel (%p1257) target = $region60
      $region59: #{clip_penultimate_forward.9} parent=55 // pred_region
        %p1260 = scmp.lt.s32.totalorder %s19, 1
        %s1261 = scalar_select %p1260, %s19, 1
        %s1262 = smul.addr %s1261, 3
        %s1263 = smul.addr %s1262, 8
        %s1264 = scalar_lea.vmem %s7, %s1263
      $region60: #{clip_penultimate_forward.9} parent=55 // pred_fallthru
        _
    $region56: #{clip_penultimate_forward.9} parent=5 // pred_fallthru
      _
  $region6: #{clip_penultimate_forward.9} parent=0 // loop_footer
    %s17 = sadd.s32 1, %s13
  $region7: #{clip_penultimate_forward.9} parent=0 // loop_footer_branch
    %12 = sbr.rel target = $region3
  $region8: #{clip_penultimate_forward.9} parent=0 // loop_exit
    _

// kernel: clip_penultimate_forward.13
$region0: #{clip_penultimate_forward.13}
  #allocation0 [shape = 'u32[]', space=smem, size = 0x4, offset = 0x4, fixed_abs, tag = 'smem constant byte address 0x4 - core index']
  #allocation1 [shape = 'u32[144,128]{1,0:T(1,128)}', space=vmem, size = 0x12000, scoped, tag = 'internal scratch']
  #allocation2 [shape = 'f32[1,1]{1,0:T(1,128)S(1)}', space=vmem, size = 0x200, scoped, tag = 'scoped memory for clip_penultimate_forward.13']
  %s0 = inlined_call_operand.vmem [shape: f32[2,32], index: 0, kind: input, shape index: {}]
  %s1 = inlined_call_operand.vmem [shape: f32[1,32], index: 1, kind: input, shape index: {}]
  %s2 = inlined_call_operand.vmem [shape: f32[1,32], index: 2, kind: input, shape index: {}]
  %s3 = inlined_call_operand.vmem [shape: bf16[32,1], index: 3, kind: input, shape index: {}]
  %s4 = inlined_call_operand.<no memory space> [shape: f32[1,1], index: 4, kind: input, shape index: {}]
  %s5 = inlined_call_operand.vmem [shape: f32[2,1], index: 5, kind: output, shape index: {}]
  %s6 = sld [smem:[#allocation0]]
  $region30: #{clip_penultimate_forward.13} parent=0
    _
  %s8 = ssub.s32 1, %s6
  %s9 = scalar_select 0, %s8, %s6
  %v10 = vstv %s4
  %11 = vst [vmem:[#allocation2] sm:$0x1] %v10
  // Predicated region
  $region2: #{clip_penultimate_forward.13} parent=0 // pred_check
    _
  $region3: #{clip_penultimate_forward.13} parent=0 // pred_check_branch
    %13 = sbr.rel (0) target = $region5
  $region4: #{clip_penultimate_forward.13} parent=0 // pred_region
    _
  $region5: #{clip_penultimate_forward.13} parent=0 // pred_fallthru
    _
  // Predicated region
  $region6: #{clip_penultimate_forward.13} parent=0 // pred_check
    _
  $region7: #{clip_penultimate_forward.13} parent=0 // pred_check_branch
    %15 = sbr.rel (0) target = $region9
  $region8: #{clip_penultimate_forward.13} parent=0 // pred_region
    _
  $region9: #{clip_penultimate_forward.13} parent=0 // pred_fallthru
    _
  // Predicated region
  $region10: #{clip_penultimate_forward.13} parent=0 // pred_check
    _
  $region11: #{clip_penultimate_forward.13} parent=0 // pred_check_branch
    %17 = sbr.rel (0) target = $region13
  $region12: #{clip_penultimate_forward.13} parent=0 // pred_region
    _
  $region13: #{clip_penultimate_forward.13} parent=0 // pred_fallthru
    _
  // Predicated region
  $region14: #{clip_penultimate_forward.13} parent=0 // pred_check
    _
  $region15: #{clip_penultimate_forward.13} parent=0 // pred_check_branch
    %19 = sbr.rel (0) target = $region17
  $region16: #{clip_penultimate_forward.13} parent=0 // pred_region
    _
  $region17: #{clip_penultimate_forward.13} parent=0 // pred_fallthru
    _
  // Predicated region
  $region18: #{clip_penultimate_forward.13} parent=0 // pred_check
    _
  $region19: #{clip_penultimate_forward.13} parent=0 // pred_check_branch
    %21 = sbr.rel (0) target = $region21
  $region20: #{clip_penultimate_forward.13} parent=0 // pred_region
    _
  $region21: #{clip_penultimate_forward.13} parent=0 // pred_fallthru
    _
  %v23 = vld [vmem:[%s0] sm:$0x3]
  %v24 = vld [vmem:[%s1] sm:$0x1]
  %v25 = vld [vmem:[%s2] sm:$0x1]
  %vm26 = vcmask 254976
  %v27 = vsel %vm26, %v23, 0.0
  %28 = vadd.xlane.f32.xlu0 %v27
  %v29 = vpop.xlane.xlu0 %28
  %v30 = vrcp.pop 32.0
  %v31 = vmul.f32 %v29, %v30
  %v32 = vsub.f32 %v23, %v31
  %v33 = vmul.f32 %v32, %v32
  %v34 = vsel %vm26, %v33, 0.0
  %35 = vadd.xlane.f32.xlu0 %v34
  %v36 = vpop.xlane.xlu0 %35
  %v37 = vmul.f32 %v36, %v30
  %v38 = vadd.f32 %v37, 1e-05
  %v39 = vrsqrt.pop %v38
  %v40 = vmul.f32 %v32, %v39
  %v42 = vlaneseq
  %v43 = vshrl.u32 %v42, 7
  %v44 = vsub.s32 0, %v43
  %v45 = vrot.slane %v24, %v44
  %v47 = vmul.f32 %v40, %v45
  %v49 = vlaneseq
  %v50 = vshrl.u32 %v49, 7
  %v51 = vsub.s32 0, %v50
  %v52 = vrot.slane %v25, %v51
  %v54 = vadd.f32 %v47, %v52
  %v55 = vpack.c.bf16 %v54, %v54
  %v56 = vld [vmem:[%s3] sm:$0xf]
  %v57 = vld [vmem:[%s3 + $0x4] sm:$0xf]
  %v58 = vld [vmem:[%s3 + $0x8] sm:$0xf]
  %v59 = vld [vmem:[%s3 + $0xc] sm:$0xf]
  %v60 = vld [vmem:[#allocation2] sm:$0x1]
  %v62 = vlaneseq
  %v63 = vshrl.u32 %v62, 7
  %v64 = vsub.s32 0, %v63
  %v65 = vrot.slane %v60, %v64
  %v71 = vunpack.c.l.b16 %v56
  %v72 = vunpack.c.l.b16 %v57
  %v73 = vunpack.c.l.b16 %v58
  %v74 = vunpack.c.l.b16 %v59
  %v75 = vpack.c.b16 %v72, %v71
  %v76 = vpack.c.b16 %v74, %v73
  %vm79 = vcmask 261120
  %v81 = vsel %vm79, %v55, 0
  %83 = vmatprep.subr.bf16.mxu0 0
  %84 = vmatpush1.bf16.msra.mxu0 %v75
  %85 = vmatprep.subr.bf16.mxu0 0
  %86 = vmatpush1.bf16.msra.mxu0 %v76
  %87 = vmatprep.subr.bf16.mxu0 0
  %88 = vmatpush1.bf16.msra.mxu0 0
  %89 = vmatprep.subr.bf16.mxu0 0
  %90 = vmatpush1.bf16.msra.mxu0 0
  %91 = vmatprep.subr.bf16.mxu0 0
  %92 = vmatpush1.bf16.msra.mxu0 0
  %93 = vmatprep.subr.bf16.mxu0 0
  %94 = vmatpush1.bf16.msra.mxu0 0
  %95 = vmatprep.subr.bf16.mxu0 0
  %96 = vmatpush1.bf16.msra.mxu0 0
  %97 = vmatprep.subr.bf16.mxu0 0
  %98 = vmatpush1.bf16.msra.mxu0 0
  %99 = vmatprep.subr.bf16.mxu0 0
  %100 = vmatpush1.bf16.msra.mxu0 0
  %101 = vmatprep.subr.bf16.mxu0 0
  %102 = vmatpush1.bf16.msra.mxu0 0
  %103 = vmatprep.subr.bf16.mxu0 0
  %104 = vmatpush1.bf16.msra.mxu0 0
  %105 = vmatprep.subr.bf16.mxu0 0
  %106 = vmatpush1.bf16.msra.mxu0 0
  %107 = vmatprep.subr.bf16.mxu0 0
  %108 = vmatpush1.bf16.msra.mxu0 0
  %109 = vmatprep.subr.bf16.mxu0 0
  %110 = vmatpush1.bf16.msra.mxu0 0
  %111 = vmatprep.subr.bf16.mxu0 0
  %112 = vmatpush1.bf16.msra.mxu0 0
  %113 = vmatprep.subr.bf16.mxu0 0
  %114 = vmatpush1.bf16.msra.mxu0 0
  %115 = vmatprep.mubr.bf16.mxu0 0
  %116 = vmatmul.mubr.bf16.gmra.mrb[0].mxu0 %v81
  %v117 = vpop.f32.mrb[0].mxu0
  %v118 = vadd.f32 %v65, %v117
  %v119 = vpop.f32.mrb[0].mxu0
  %v120 = vpop.f32.mrb[0].mxu0
  %v121 = vpop.f32.mrb[0].mxu0
  %122 = vdwg.mxu0
  %vm123 = vcmask 1024
  %124 = vst.msk [vmem:[%s5] sm:$0x3] %vm123, %v118
  // Predicated region
  $region22: #{clip_penultimate_forward.13} parent=0 // pred_check
    _
  $region23: #{clip_penultimate_forward.13} parent=0 // pred_check_branch
    %126 = sbr.rel (0) target = $region25
  $region24: #{clip_penultimate_forward.13} parent=0 // pred_region
    _
  $region25: #{clip_penultimate_forward.13} parent=0 // pred_fallthru
    _
  // Predicated region
  $region26: #{clip_penultimate_forward.13} parent=0 // pred_check
    _
  $region27: #{clip_penultimate_forward.13} parent=0 // pred_check_branch
    %128 = sbr.rel (0) target = $region29
  $region28: #{clip_penultimate_forward.13} parent=0 // pred_region
    _
  $region29: #{clip_penultimate_forward.13} parent=0 // pred_fallthru
    _

</llo_original>
